<compile_context>
chip_gen: v6e
topology: v6e:2x2x1
jax: 0.10.0
libtpu: 0.0.40
codegen_flags: <defaults>
</compile_context>

<pallas_src>
import jax
import jax.numpy as jnp
from jax import lax
from jax.experimental import pallas as pl
from jax.experimental.pallas import tpu as pltpu

BN_EPS = 1e-5
LEAKY_SLOPE = 0.01            # torch.nn.LeakyReLU() default
HIDDEN = 128                  # nn.Linear(input_dim, 128)
TILE_N = 8192                 # batch rows per grid step (multiple of 128)
VMEM_LIMIT = 32 * 1024 * 1024  # safe on v5e / v6e / v7x (64 MiB physical per TC on v7x)


def _round_up(a, b):
    return ((a + b - 1) // b) * b


def _choose_tiling(n):
    """Pick (tile_rows, total_tiles); total_tiles is 1 or even (megacore-friendly)."""
    n128 = _round_up(n, 128)
    if n128 <= 256:
        return n128, 1
    num_pairs = max(1, -(-n128 // (2 * TILE_N)))     # ceil
    total = 2 * num_pairs
    tile = _round_up(-(-n128 // total), 128)         # <= TILE_N by construction
    return tile, total


def _matmul_nt(w, x):
    """(H, D) x (T, D) -> (H, T): contract the shared last dim; f32 accumulate."""
    return lax.dot_general(
        w, x, dimension_numbers=(((1,), (1,)), ((), ())),
        preferred_element_type=jnp.float32)


def stats_kernel(x_ref, w1t_ref, sum_ref, sumsq_ref):
    """Pass 1: per-feature sum / sum-of-squares of h1 = x @ W1 over the batch.

    Grid = (num_slots, tiles_per_slot): the leading "parallel" axis gives each
    TensorCore (v7x megacore) its own accumulator slot; the trailing
    "arbitrary" axis is the batch-tile reduction.  Zero-padded batch rows
    contribute exactly 0 (b1 is dropped — it cancels under training-mode BN).
    """
    i = pl.program_id(1)
    h1t = _matmul_nt(w1t_ref[...], x_ref[...])                 # (H, tile) f32

    @pl.when(i == 0)
    def _():
        sum_ref[...] = jnp.zeros_like(sum_ref)
        sumsq_ref[...] = jnp.zeros_like(sumsq_ref)

    sum_ref[...] += jnp.sum(h1t, axis=1, keepdims=True)[None]           # (1,H,1)
    sumsq_ref[...] += jnp.sum(h1t * h1t, axis=1, keepdims=True)[None]   # (1,H,1)


def apply_kernel(x_ref, w1t_ref, sum_ref, sumsq_ref, bn_ref, w2t_ref,
                 vec_ref, sc_ref, o_ref):
    """Pass 2: BN fold (from pass-1 stats, computed in-kernel) + MLP head.

    BN scale folds into the W1^T rows and BN shift into the Linear(128,3)
    bias.  Activations stay transposed (features x batch) so the output block
    is a lane-dense (1, tile) row.
    """
    inv_n = sc_ref[0:1, 1:2]                                   # (1,1)
    b3 = sc_ref[0:1, 0:1]                                      # (1,1)
    s = jnp.sum(sum_ref[...], axis=0)                          # (H,1) combine TC slots
    ss = jnp.sum(sumsq_ref[...], axis=0)                       # (H,1)
    mean = s * inv_n
    var = jnp.maximum(ss * inv_n - mean * mean, 0.0)           # biased (train mode)
    inv_std = lax.rsqrt(var + BN_EPS)                          # EUP
    scale = bn_ref[:, 0:1] * inv_std                           # gamma * inv_std
    shift = bn_ref[:, 1:2] - mean * scale                      # beta - mean*scale

    # (H, tile): big matmul emits already-BN-scaled activations (scale folded
    # into W1^T rows — a 128x32 VPU multiply, hidden under the x DMA).
    h1t = _matmul_nt(w1t_ref[...] * scale, x_ref[...])
    b2f = jnp.dot(w2t_ref[...], shift,
                  preferred_element_type=jnp.float32) + vec_ref[:, 0:1]   # (3,1)
    h2t = jnp.dot(w2t_ref[...], h1t,
                  preferred_element_type=jnp.float32) + b2f               # (3, tile)
    h2t = jnp.where(h2t >= 0.0, h2t, LEAKY_SLOPE * h2t)                   # LeakyReLU
    # Linear(3 -> 1): VPU multiply + 3-row sublane reduction (no K=3 MXU pass).
    h3t = jnp.sum(h2t * vec_ref[:, 1:2], axis=0, keepdims=True) + b3      # (1, tile)
    o_ref[...] = jax.nn.sigmoid(h3t).astype(o_ref.dtype)


@jax.jit
def pu_model_forward(x, params):
    """x: (N, input_dim) float32 -> (N, 1) float32 (training-mode BatchNorm)."""
    N, D = x.shape
    assert params["w1"].shape == (D, HIDDEN), "input_dim / hidden-width mismatch"
    assert params["w2"].shape == (HIDDEN, 3) and params["w3"].shape == (3, 1)

    tile, total_tiles = _choose_tiling(N)
    assert tile % 128 == 0
    n_pad = tile * total_tiles
    if n_pad != N:
        # Zero rows contribute 0 to the h1 stats (b1 is dropped), so padding is
        # exact; padded outputs are sliced off below.
        x = jnp.pad(x, ((0, n_pad - N), (0, 0)))
    num_slots = 1 if total_tiles == 1 else 2
    tiles_per_slot = total_tiles // num_slots

    # Everything below depends only on params / static N (not on pass-1
    # output), so XLA overlaps this tiny prep with pass 1 — no glue on the
    # pass1 -> pass2 critical path.
    w1t = params["w1"].T                                              # (H, D) f32
    bn = jnp.concatenate([params["gamma"].reshape(-1, 1),
                          params["beta"].reshape(-1, 1)], axis=1)     # (H, 2)
    w2t = params["w2"].T                                              # (3, H)
    vec = jnp.concatenate([params["b2"].reshape(-1, 1),
                           params["w3"].reshape(-1, 1)], axis=1)      # (3, 2)
    sc = jnp.concatenate([params["b3"].reshape(1, 1),
                          jnp.full((1, 1), 1.0 / N, jnp.float32)], axis=1)  # (1, 2)

    # ---------------- pass 1: global BN statistics ----------------
    col_sum, col_sumsq = pl.pallas_call(
        stats_kernel,
        out_shape=(jax.ShapeDtypeStruct((num_slots, HIDDEN, 1), jnp.float32),
                   jax.ShapeDtypeStruct((num_slots, HIDDEN, 1), jnp.float32)),
        grid=(num_slots, tiles_per_slot),
        in_specs=[
            pl.BlockSpec((tile, D), lambda c, i: (c * tiles_per_slot + i, 0)),
            pl.BlockSpec((HIDDEN, D), lambda c, i: (0, 0)),
        ],
        out_specs=(pl.BlockSpec((1, HIDDEN, 1), lambda c, i: (c, 0, 0)),
                   pl.BlockSpec((1, HIDDEN, 1), lambda c, i: (c, 0, 0))),
        compiler_params=pltpu.CompilerParams(
            dimension_semantics=("parallel", "arbitrary"),
            vmem_limit_bytes=VMEM_LIMIT),
        cost_estimate=pl.CostEstimate(
            flops=2 * n_pad * D * HIDDEN + 3 * n_pad * HIDDEN,
            transcendentals=0,
            bytes_accessed=n_pad * D * 4 + HIDDEN * D * 4
                           + 2 * num_slots * HIDDEN * 4),
    )(x, w1t)

    # -------- pass 2: in-kernel BN fold + MLP head, lane-dense output --------
    out_row = pl.pallas_call(
        apply_kernel,
        out_shape=jax.ShapeDtypeStruct((1, n_pad), jnp.float32),
        grid=(total_tiles,),
        in_specs=[
            pl.BlockSpec((tile, D), lambda i: (i, 0)),
            pl.BlockSpec((HIDDEN, D), lambda i: (0, 0)),
            pl.BlockSpec((num_slots, HIDDEN, 1), lambda i: (0, 0, 0)),
            pl.BlockSpec((num_slots, HIDDEN, 1), lambda i: (0, 0, 0)),
            pl.BlockSpec((HIDDEN, 2), lambda i: (0, 0)),
            pl.BlockSpec((3, HIDDEN), lambda i: (0, 0)),
            pl.BlockSpec((3, 2), lambda i: (0, 0)),
            pl.BlockSpec((1, 2), lambda i: (0, 0)),
        ],
        out_specs=pl.BlockSpec((1, tile), lambda i: (0, i)),
        compiler_params=pltpu.CompilerParams(
            dimension_semantics=("parallel",),
            vmem_limit_bytes=VMEM_LIMIT),
        cost_estimate=pl.CostEstimate(
            flops=2 * n_pad * D * HIDDEN + 2 * n_pad * HIDDEN * 3 + 12 * n_pad,
            transcendentals=n_pad,
            bytes_accessed=n_pad * D * 4 + n_pad * 4),
    )(x, w1t, col_sum, col_sumsq, bn, w2t, vec, sc)

    return out_row[0, :N].reshape(N, 1)


def init_params(key, input_dim):
    """Deterministic init mirroring the PyTorch layer shapes.

    Weights stored as (in_features, out_features) so y = x @ W + b.
    """
    k1, k2, k3, k4, k5, k6 = jax.random.split(key, 6)

    def linear_init(kw, kb, fan_in, fan_out):
        bound_w = (1.0 / fan_in) ** 0.5 * (3.0 ** 0.5)
        bound_b = (1.0 / fan_in) ** 0.5
        w = jax.random.uniform(kw, (fan_in, fan_out), jnp.float32, -bound_w, bound_w)
        b = jax.random.uniform(kb, (1, fan_out), jnp.float32, -bound_b, bound_b)
        return w, b

    w1, b1 = linear_init(k1, k2, input_dim, HIDDEN)
    w2, b2 = linear_init(k3, k4, HIDDEN, 3)
    w3, b3 = linear_init(k5, k6, 3, 1)
    gamma = jnp.ones((1, HIDDEN), jnp.float32)   # BatchNorm1d defaults
    beta = jnp.zeros((1, HIDDEN), jnp.float32)
    return dict(w1=w1, b1=b1, gamma=gamma, beta=beta,
                w2=w2, b2=b2, w3=w3, b3=b3)


def reference_forward(x, params):
    """Pure-JAX reference mirroring the PyTorch module (training-mode BN).

    Includes b1 explicitly (the kernel drops it — it cancels under BN).
    """
    hp = lax.Precision.HIGHEST
    h1 = jnp.dot(x, params["w1"], precision=hp) + params["b1"]
    mean = jnp.mean(h1, axis=0, keepdims=True)
    var = jnp.mean((h1 - mean) ** 2, axis=0, keepdims=True)
    h1n = (h1 - mean) * lax.rsqrt(var + BN_EPS) * params["gamma"] + params["beta"]
    h2 = jnp.dot(h1n, params["w2"], precision=hp) + params["b2"]
    h2 = jnp.where(h2 >= 0.0, h2, LEAKY_SLOPE * h2)
    h3 = jnp.dot(h2, params["w3"], precision=hp) + params["b3"]
    return jax.nn.sigmoid(h3)


if __name__ == "__main__":
    key = jax.random.PRNGKey(0)
    kx, kp, kx2 = jax.random.split(key, 3)

    INPUT_DIM = 32
    params = init_params(kp, INPUT_DIM)

    # Small case (single tile).
    N = 8
    x = jax.random.normal(kx, (N, INPUT_DIM), jnp.float32)
    out = jax.block_until_ready(pu_model_forward(x, params))
    ref = reference_forward(x, params)
    assert out.shape == (N, 1)
    assert jnp.allclose(out, ref, atol=2e-3, rtol=2e-3), "mismatch vs f32 reference"

    # Multi-tile case: exercises the batch grid, zero padding, and the 2-slot
    # (megacore) stats accumulators being combined inside the apply kernel.
    N2 = 1500
    x2 = jax.random.normal(kx2, (N2, INPUT_DIM), jnp.float32)
    out2 = jax.block_until_ready(pu_model_forward(x2, params))
    ref2 = reference_forward(x2, params)
    assert out2.shape == (N2, 1)
    assert jnp.allclose(out2, ref2, atol=2e-3, rtol=2e-3), "multi-tile mismatch"

    print("KERNEL_OK")
</pallas_src>

<mosaic_0001>
module attributes {stable_mosaic.version = 11 : i64} {
  func.func @apply_kernel(%arg0: i32, %arg1: memref<128x32xf32, #tpu.memory_space<vmem>>, %arg2: memref<128x32xf32, #tpu.memory_space<vmem>>, %arg3: memref<1x128x1xf32, #tpu.memory_space<vmem>>, %arg4: memref<1x128x1xf32, #tpu.memory_space<vmem>>, %arg5: memref<128x2xf32, #tpu.memory_space<vmem>>, %arg6: memref<3x128xf32, #tpu.memory_space<vmem>>, %arg7: memref<3x2xf32, #tpu.memory_space<vmem>>, %arg8: memref<1x2xf32, #tpu.memory_space<vmem>>, %arg9: memref<1x128xf32, #tpu.memory_space<vmem>>) attributes {dimension_semantics = [#tpu.dimension_semantics<parallel>], iteration_bounds = array<i64: 1>, scalar_prefetch = 0 : i64, scratch_operands = 0 : i64, tpu.core_type = #tpu.core_type<tc>, window_params = [{transform_indices = @transform_0, window_bounds = array<i64: 128, 32>}, {pipeline_mode = #tpu.pipeline_mode<synchronous>, transform_indices = @transform_1, window_bounds = array<i64: 128, 32>}, {pipeline_mode = #tpu.pipeline_mode<synchronous>, transform_indices = @transform_2, window_bounds = array<i64: 1, 128, 1>}, {pipeline_mode = #tpu.pipeline_mode<synchronous>, transform_indices = @transform_3, window_bounds = array<i64: 1, 128, 1>}, {pipeline_mode = #tpu.pipeline_mode<synchronous>, transform_indices = @transform_4, window_bounds = array<i64: 128, 2>}, {pipeline_mode = #tpu.pipeline_mode<synchronous>, transform_indices = @transform_5, window_bounds = array<i64: 3, 128>}, {pipeline_mode = #tpu.pipeline_mode<synchronous>, transform_indices = @transform_6, window_bounds = array<i64: 3, 2>}, {pipeline_mode = #tpu.pipeline_mode<synchronous>, transform_indices = @transform_7, window_bounds = array<i64: 1, 2>}, {transform_indices = @transform_8, window_bounds = array<i64: 1, 128>}]} {
    %c0 = arith.constant 0 : index
    %c1 = arith.constant 1 : index
    %0 = vector.load %arg8[%c0, %c1] : memref<1x2xf32, #tpu.memory_space<vmem>>, vector<1x1xf32>
    %c0_0 = arith.constant 0 : index
    %c0_1 = arith.constant 0 : index
    %1 = vector.load %arg8[%c0_0, %c0_1] : memref<1x2xf32, #tpu.memory_space<vmem>>, vector<1x1xf32>
    %c0_2 = arith.constant 0 : index
    %c0_3 = arith.constant 0 : index
    %c0_4 = arith.constant 0 : index
    %2 = vector.load %arg3[%c0_2, %c0_3, %c0_4] : memref<1x128x1xf32, #tpu.memory_space<vmem>>, vector<1x128x1xf32>
    %cst = arith.constant dense<0.000000e+00> : vector<128x1xf32>
    %3 = vector.multi_reduction <add>, %2, %cst [0] : vector<1x128x1xf32> to vector<128x1xf32>
    %c0_5 = arith.constant 0 : index
    %c0_6 = arith.constant 0 : index
    %c0_7 = arith.constant 0 : index
    %4 = vector.load %arg4[%c0_5, %c0_6, %c0_7] : memref<1x128x1xf32, #tpu.memory_space<vmem>>, vector<1x128x1xf32>
    %cst_8 = arith.constant dense<0.000000e+00> : vector<128x1xf32>
    %5 = vector.multi_reduction <add>, %4, %cst_8 [0] : vector<1x128x1xf32> to vector<128x1xf32>
    %6 = vector.broadcast %0 : vector<1x1xf32> to vector<128x1xf32>
    %7 = arith.mulf %3, %6 : vector<128x1xf32>
    %8 = vector.broadcast %0 : vector<1x1xf32> to vector<128x1xf32>
    %9 = arith.mulf %5, %8 : vector<128x1xf32>
    %10 = arith.mulf %7, %7 : vector<128x1xf32>
    %11 = arith.subf %9, %10 : vector<128x1xf32>
    %cst_9 = arith.constant 0.000000e+00 : f32
    %12 = vector.broadcast %cst_9 : f32 to vector<128x1xf32>
    %13 = arith.maximumf %11, %12 : vector<128x1xf32>
    %cst_10 = arith.constant 9.99999974E-6 : f32
    %14 = vector.broadcast %cst_10 : f32 to vector<128x1xf32>
    %15 = arith.addf %13, %14 : vector<128x1xf32>
    %16 = math.rsqrt %15 : vector<128x1xf32>
    %c0_11 = arith.constant 0 : index
    %c0_12 = arith.constant 0 : index
    %17 = vector.load %arg5[%c0_11, %c0_12] : memref<128x2xf32, #tpu.memory_space<vmem>>, vector<128x1xf32>
    %18 = arith.mulf %17, %16 : vector<128x1xf32>
    %c0_13 = arith.constant 0 : index
    %c1_14 = arith.constant 1 : index
    %19 = vector.load %arg5[%c0_13, %c1_14] : memref<128x2xf32, #tpu.memory_space<vmem>>, vector<128x1xf32>
    %20 = arith.mulf %7, %18 : vector<128x1xf32>
    %21 = arith.subf %19, %20 : vector<128x1xf32>
    %c0_15 = arith.constant 0 : index
    %c0_16 = arith.constant 0 : index
    %22 = vector.load %arg2[%c0_15, %c0_16] : memref<128x32xf32, #tpu.memory_space<vmem>>, vector<128x32xf32>
    %23 = vector.broadcast %18 : vector<128x1xf32> to vector<128x32xf32>
    %24 = arith.mulf %22, %23 : vector<128x32xf32>
    %c0_17 = arith.constant 0 : index
    %c0_18 = arith.constant 0 : index
    %25 = vector.load %arg1[%c0_17, %c0_18] : memref<128x32xf32, #tpu.memory_space<vmem>>, vector<128x32xf32>
    %cst_19 = arith.constant dense<0.000000e+00> : vector<128x128xf32>
    %26 = tpu.matmul %24, %25, %cst_19 {dimension_numbers = #tpu.dot_dimension_numbers<[1], [1], [0], [0], [0, 0, 1, 0], [], []>} : vector<128x32xf32>, vector<128x32xf32>, vector<128x128xf32> -> vector<128x128xf32>
    %c0_20 = arith.constant 0 : index
    %c0_21 = arith.constant 0 : index
    %27 = vector.load %arg6[%c0_20, %c0_21] : memref<3x128xf32, #tpu.memory_space<vmem>>, vector<3x128xf32>
    %cst_22 = arith.constant dense<0.000000e+00> : vector<3x1xf32>
    %28 = tpu.matmul %27, %21, %cst_22 {dimension_numbers = #tpu.dot_dimension_numbers<[1], [0], [0], [1], [0, 0, 1, 1], [], []>} : vector<3x128xf32>, vector<128x1xf32>, vector<3x1xf32> -> vector<3x1xf32>
    %c0_23 = arith.constant 0 : index
    %c0_24 = arith.constant 0 : index
    %29 = vector.load %arg7[%c0_23, %c0_24] : memref<3x2xf32, #tpu.memory_space<vmem>>, vector<3x1xf32>
    %30 = arith.addf %28, %29 : vector<3x1xf32>
    %c0_25 = arith.constant 0 : index
    %c0_26 = arith.constant 0 : index
    %31 = vector.load %arg6[%c0_25, %c0_26] : memref<3x128xf32, #tpu.memory_space<vmem>>, vector<3x128xf32>
    %cst_27 = arith.constant dense<0.000000e+00> : vector<3x128xf32>
    %32 = tpu.matmul %31, %26, %cst_27 {dimension_numbers = #tpu.dot_dimension_numbers<[1], [0], [0], [1], [0, 0, 1, 1], [], []>} : vector<3x128xf32>, vector<128x128xf32>, vector<3x128xf32> -> vector<3x128xf32>
    %33 = vector.broadcast %30 : vector<3x1xf32> to vector<3x128xf32>
    %34 = arith.addf %32, %33 : vector<3x128xf32>
    %cst_28 = arith.constant 0.000000e+00 : f32
    %35 = vector.broadcast %cst_28 : f32 to vector<3x128xf32>
    %36 = arith.cmpf oge, %34, %35 : vector<3x128xf32>
    %cst_29 = arith.constant 0.00999999977 : f32
    %37 = vector.broadcast %cst_29 : f32 to vector<3x128xf32>
    %38 = arith.mulf %37, %34 : vector<3x128xf32>
    %39 = arith.select %36, %34, %38 : vector<3x128xi1>, vector<3x128xf32>
    %c0_30 = arith.constant 0 : index
    %c1_31 = arith.constant 1 : index
    %40 = vector.load %arg7[%c0_30, %c1_31] : memref<3x2xf32, #tpu.memory_space<vmem>>, vector<3x1xf32>
    %41 = vector.broadcast %40 : vector<3x1xf32> to vector<3x128xf32>
    %42 = arith.mulf %39, %41 : vector<3x128xf32>
    %cst_32 = arith.constant dense<0.000000e+00> : vector<128xf32>
    %43 = vector.multi_reduction <add>, %42, %cst_32 [0] : vector<3x128xf32> to vector<128xf32>
    %44 = vector.shape_cast %43 : vector<128xf32> to vector<1x128xf32>
    %45 = vector.broadcast %1 : vector<1x1xf32> to vector<1x128xf32>
    %46 = arith.addf %44, %45 : vector<1x128xf32>
    %47 = arith.negf %46 : vector<1x128xf32>
    %48 = math.exp %47 : vector<1x128xf32>
    %cst_33 = arith.constant 1.000000e+00 : f32
    %49 = vector.broadcast %cst_33 : f32 to vector<1x128xf32>
    %50 = arith.addf %49, %48 : vector<1x128xf32>
    %51 = arith.divf %49, %50 : vector<1x128xf32>
    %c0_34 = arith.constant 0 : index
    %c0_35 = arith.constant 0 : index
    %52 = vector.load %arg9[%c0_34, %c0_35] : memref<1x128xf32, #tpu.memory_space<vmem>>, vector<1x128xf32>
    tpu.vector_store %arg9[%c0_34, %c0_35], %51 {strides = array<i32>} : memref<1x128xf32, #tpu.memory_space<vmem>>, vector<1x128xf32>,
    return
  }
  func.func @transform_0(%arg0: i32) -> (i32, i32) {
    %c0_i32 = arith.constant 0 : i32
    %c0_i32_0 = arith.constant 0 : i32
    return %arg0, %c0_i32 : i32, i32
  }
  func.func @transform_1(%arg0: i32) -> (i32, i32) {
    %c0_i32 = arith.constant 0 : i32
    %c0_i32_0 = arith.constant 0 : i32
    %c0_i32_1 = arith.constant 0 : i32
    return %c0_i32, %c0_i32_0 : i32, i32
  }
  func.func @transform_2(%arg0: i32) -> (i32, i32, i32) {
    %c0_i32 = arith.constant 0 : i32
    %c0_i32_0 = arith.constant 0 : i32
    %c0_i32_1 = arith.constant 0 : i32
    %c0_i32_2 = arith.constant 0 : i32
    return %c0_i32, %c0_i32_0, %c0_i32_1 : i32, i32, i32
  }
  func.func @transform_3(%arg0: i32) -> (i32, i32, i32) {
    %c0_i32 = arith.constant 0 : i32
    %c0_i32_0 = arith.constant 0 : i32
    %c0_i32_1 = arith.constant 0 : i32
    %c0_i32_2 = arith.constant 0 : i32
    return %c0_i32, %c0_i32_0, %c0_i32_1 : i32, i32, i32
  }
  func.func @transform_4(%arg0: i32) -> (i32, i32) {
    %c0_i32 = arith.constant 0 : i32
    %c0_i32_0 = arith.constant 0 : i32
    %c0_i32_1 = arith.constant 0 : i32
    return %c0_i32, %c0_i32_0 : i32, i32
  }
  func.func @transform_5(%arg0: i32) -> (i32, i32) {
    %c0_i32 = arith.constant 0 : i32
    %c0_i32_0 = arith.constant 0 : i32
    %c0_i32_1 = arith.constant 0 : i32
    return %c0_i32, %c0_i32_0 : i32, i32
  }
  func.func @transform_6(%arg0: i32) -> (i32, i32) {
    %c0_i32 = arith.constant 0 : i32
    %c0_i32_0 = arith.constant 0 : i32
    %c0_i32_1 = arith.constant 0 : i32
    return %c0_i32, %c0_i32_0 : i32, i32
  }
  func.func @transform_7(%arg0: i32) -> (i32, i32) {
    %c0_i32 = arith.constant 0 : i32
    %c0_i32_0 = arith.constant 0 : i32
    %c0_i32_1 = arith.constant 0 : i32
    return %c0_i32, %c0_i32_0 : i32, i32
  }
  func.func @transform_8(%arg0: i32) -> (i32, i32) {
    %c0_i32 = arith.constant 0 : i32
    %c0_i32_0 = arith.constant 0 : i32
    return %c0_i32, %arg0 : i32, i32
  }
}

module attributes {stable_mosaic.version = 11 : i64} {
  func.func @stats_kernel(%arg0: i32, %arg1: i32, %arg2: memref<128x32xf32, #tpu.memory_space<vmem>>, %arg3: memref<128x32xf32, #tpu.memory_space<vmem>>, %arg4: memref<1x128x1xf32, #tpu.memory_space<vmem>>, %arg5: memref<1x128x1xf32, #tpu.memory_space<vmem>>) attributes {dimension_semantics = [#tpu.dimension_semantics<parallel>, #tpu.dimension_semantics<arbitrary>], iteration_bounds = array<i64: 1, 1>, scalar_prefetch = 0 : i64, scratch_operands = 0 : i64, tpu.core_type = #tpu.core_type<tc>, window_params = [{transform_indices = @transform_0, window_bounds = array<i64: 128, 32>}, {pipeline_mode = #tpu.pipeline_mode<synchronous>, transform_indices = @transform_1, window_bounds = array<i64: 128, 32>}, {transform_indices = @transform_2, window_bounds = array<i64: 1, 128, 1>}, {transform_indices = @transform_3, window_bounds = array<i64: 1, 128, 1>}]} {
    %c0 = arith.constant 0 : index
    %c0_0 = arith.constant 0 : index
    %0 = vector.load %arg3[%c0, %c0_0] : memref<128x32xf32, #tpu.memory_space<vmem>>, vector<128x32xf32>
    %c0_1 = arith.constant 0 : index
    %c0_2 = arith.constant 0 : index
    %1 = vector.load %arg2[%c0_1, %c0_2] : memref<128x32xf32, #tpu.memory_space<vmem>>, vector<128x32xf32>
    %cst = arith.constant dense<0.000000e+00> : vector<128x128xf32>
    %2 = tpu.matmul %0, %1, %cst {dimension_numbers = #tpu.dot_dimension_numbers<[1], [1], [0], [0], [0, 0, 1, 0], [], []>} : vector<128x32xf32>, vector<128x32xf32>, vector<128x128xf32> -> vector<128x128xf32>
    %c0_i32 = arith.constant 0 : i32
    %3 = arith.cmpi eq, %arg1, %c0_i32 : i32
    %4 = arith.extui %3 : i1 to i32
    %c0_i32_3 = arith.constant 0 : i32
    %5 = arith.cmpi ne, %4, %c0_i32_3 : i32
    scf.if %5 {
      %cst_18 = arith.constant 0.000000e+00 : f32
      %19 = vector.broadcast %cst_18 : f32 to vector<1x128x1xf32>
      %c0_19 = arith.constant 0 : index
      %c0_20 = arith.constant 0 : index
      %c0_21 = arith.constant 0 : index
      %20 = vector.load %arg4[%c0_19, %c0_20, %c0_21] : memref<1x128x1xf32, #tpu.memory_space<vmem>>, vector<1x128x1xf32>
      tpu.vector_store %arg4[%c0_19, %c0_20, %c0_21], %19 {strides = array<i32>} : memref<1x128x1xf32, #tpu.memory_space<vmem>>, vector<1x128x1xf32>,
      %cst_22 = arith.constant 0.000000e+00 : f32
      %21 = vector.broadcast %cst_22 : f32 to vector<1x128x1xf32>
      %c0_23 = arith.constant 0 : index
      %c0_24 = arith.constant 0 : index
      %c0_25 = arith.constant 0 : index
      %22 = vector.load %arg5[%c0_23, %c0_24, %c0_25] : memref<1x128x1xf32, #tpu.memory_space<vmem>>, vector<1x128x1xf32>
      tpu.vector_store %arg5[%c0_23, %c0_24, %c0_25], %21 {strides = array<i32>} : memref<1x128x1xf32, #tpu.memory_space<vmem>>, vector<1x128x1xf32>,
    } else {
    }
    %c0_4 = arith.constant 0 : index
    %c0_5 = arith.constant 0 : index
    %c0_6 = arith.constant 0 : index
    %6 = vector.load %arg4[%c0_4, %c0_5, %c0_6] : memref<1x128x1xf32, #tpu.memory_space<vmem>>, vector<1x128x1xf32>
    %cst_7 = arith.constant dense<0.000000e+00> : vector<128xf32>
    %7 = vector.multi_reduction <add>, %2, %cst_7 [1] : vector<128x128xf32> to vector<128xf32>
    %8 = vector.shape_cast %7 : vector<128xf32> to vector<128x1xf32>
    %9 = vector.shape_cast %8 : vector<128x1xf32> to vector<1x128x1xf32>
    %10 = arith.addf %6, %9 : vector<1x128x1xf32>
    %c0_8 = arith.constant 0 : index
    %c0_9 = arith.constant 0 : index
    %c0_10 = arith.constant 0 : index
    %11 = vector.load %arg4[%c0_8, %c0_9, %c0_10] : memref<1x128x1xf32, #tpu.memory_space<vmem>>, vector<1x128x1xf32>
    tpu.vector_store %arg4[%c0_8, %c0_9, %c0_10], %10 {strides = array<i32>} : memref<1x128x1xf32, #tpu.memory_space<vmem>>, vector<1x128x1xf32>,
    %c0_11 = arith.constant 0 : index
    %c0_12 = arith.constant 0 : index
    %c0_13 = arith.constant 0 : index
    %12 = vector.load %arg5[%c0_11, %c0_12, %c0_13] : memref<1x128x1xf32, #tpu.memory_space<vmem>>, vector<1x128x1xf32>
    %13 = arith.mulf %2, %2 : vector<128x128xf32>
    %cst_14 = arith.constant dense<0.000000e+00> : vector<128xf32>
    %14 = vector.multi_reduction <add>, %13, %cst_14 [1] : vector<128x128xf32> to vector<128xf32>
    %15 = vector.shape_cast %14 : vector<128xf32> to vector<128x1xf32>
    %16 = vector.shape_cast %15 : vector<128x1xf32> to vector<1x128x1xf32>
    %17 = arith.addf %12, %16 : vector<1x128x1xf32>
    %c0_15 = arith.constant 0 : index
    %c0_16 = arith.constant 0 : index
    %c0_17 = arith.constant 0 : index
    %18 = vector.load %arg5[%c0_15, %c0_16, %c0_17] : memref<1x128x1xf32, #tpu.memory_space<vmem>>, vector<1x128x1xf32>
    tpu.vector_store %arg5[%c0_15, %c0_16, %c0_17], %17 {strides = array<i32>} : memref<1x128x1xf32, #tpu.memory_space<vmem>>, vector<1x128x1xf32>,
    return
  }
  func.func @transform_0(%arg0: i32, %arg1: i32) -> (i32, i32) {
    %c1_i32 = arith.constant 1 : i32
    %0 = arith.muli %arg0, %c1_i32 : i32
    %1 = arith.addi %0, %arg1 : i32
    %c0_i32 = arith.constant 0 : i32
    %c0_i32_0 = arith.constant 0 : i32
    return %1, %c0_i32 : i32, i32
  }
  func.func @transform_1(%arg0: i32, %arg1: i32) -> (i32, i32) {
    %c0_i32 = arith.constant 0 : i32
    %c0_i32_0 = arith.constant 0 : i32
    %c0_i32_1 = arith.constant 0 : i32
    return %c0_i32, %c0_i32_0 : i32, i32
  }
  func.func @transform_2(%arg0: i32, %arg1: i32) -> (i32, i32, i32) {
    %c0_i32 = arith.constant 0 : i32
    %c0_i32_0 = arith.constant 0 : i32
    %c0_i32_1 = arith.constant 0 : i32
    return %arg0, %c0_i32, %c0_i32_0 : i32, i32, i32
  }
  func.func @transform_3(%arg0: i32, %arg1: i32) -> (i32, i32, i32) {
    %c0_i32 = arith.constant 0 : i32
    %c0_i32_0 = arith.constant 0 : i32
    %c0_i32_1 = arith.constant 0 : i32
    return %arg0, %c0_i32, %c0_i32_0 : i32, i32, i32
  }
}

</mosaic_0001>

<llo_original>
// kernel: pu_model_forward.2
$region0: #{pu_model_forward.2}
  #allocation0 [shape = 'u32[]', space=smem, size = 0x4, offset = 0x4, fixed_abs, tag = 'smem constant byte address 0x4 - core index']
  #allocation1 [shape = 'u32[144,128]{1,0:T(1,128)}', space=vmem, size = 0x12000, scoped, tag = 'internal scratch']
  %s0 = inlined_call_operand.vmem [shape: f32[128,32], index: 0, kind: input, shape index: {}]
  %s1 = inlined_call_operand.vmem [shape: f32[128,32], index: 1, kind: input, shape index: {}]
  %s2 = inlined_call_operand.vmem [shape: f32[1,128,1], index: 2, kind: output, shape index: {0}]
  %s3 = inlined_call_operand.vmem [shape: f32[1,128,1], index: 3, kind: output, shape index: {1}]
  %4 = xla_tuple %s2, %s3
  %s5 = sld [smem:[#allocation0]]
  $region30: #{pu_model_forward.2} parent=0
    _
  %s7 = ssub.s32 1, %s5
  %s8 = scalar_select 0, %s7, %s5
  // Predicated region
  $region2: #{pu_model_forward.2} parent=0 // pred_check
    _
  $region3: #{pu_model_forward.2} parent=0 // pred_check_branch
    %10 = sbr.rel (0) target = $region5
  $region4: #{pu_model_forward.2} parent=0 // pred_region
    %s11 = sadd.s32 0, 0
    %s12 = smul.u32 16, %s11
    %p13 = scmp.lt.s32.totalorder %s12, 15
    %s14 = scalar_select %p13, %s12, 15
    %s15 = smul.addr %s14, 8
    %s16 = scalar_lea.vmem %s0, %s15
    %s17 = sadd.s32 0, 0
    %s18 = smul.u32 16, %s17
  $region5: #{pu_model_forward.2} parent=0 // pred_fallthru
    _
  // Predicated region
  $region6: #{pu_model_forward.2} parent=0 // pred_check
    _
  $region7: #{pu_model_forward.2} parent=0 // pred_check_branch
    %20 = sbr.rel (0) target = $region9
  $region8: #{pu_model_forward.2} parent=0 // pred_region
    _
  $region9: #{pu_model_forward.2} parent=0 // pred_fallthru
    _
  %s21 = sadd.s32 0, 0
  %s22 = smul.u32 16, %s21
  %p23 = scmp.lt.s32.totalorder %s22, 15
  %s24 = scalar_select %p23, %s22, 15
  %s25 = smul.addr %s24, 8
  %s26 = scalar_lea.vmem %s0, %s25
  %s27 = sadd.s32 0, 0
  %s28 = smul.u32 16, %s27
  %p29 = scmp.lt.s32.totalorder %s28, 15
  %s30 = scalar_select %p29, %s28, 15
  %s31 = smul.addr %s30, 8
  %s32 = scalar_lea.vmem %s0, %s31
  %s33 = sadd.s32 0, 0
  %s34 = smul.u32 16, %s33
  %v35 = vld [vmem:[%s1] sm:$0xff]
  %v36 = vld [vmem:[%s1 + $0x8] sm:$0xff]
  %v37 = vld [vmem:[%s1 + $0x10] sm:$0xff]
  %v38 = vld [vmem:[%s1 + $0x18] sm:$0xff]
  %v39 = vld [vmem:[%s1 + $0x20] sm:$0xff]
  %v40 = vld [vmem:[%s1 + $0x28] sm:$0xff]
  %v41 = vld [vmem:[%s1 + $0x30] sm:$0xff]
  %v42 = vld [vmem:[%s1 + $0x38] sm:$0xff]
  %v43 = vld [vmem:[%s1 + $0x40] sm:$0xff]
  %v44 = vld [vmem:[%s1 + $0x48] sm:$0xff]
  %v45 = vld [vmem:[%s1 + $0x50] sm:$0xff]
  %v46 = vld [vmem:[%s1 + $0x58] sm:$0xff]
  %v47 = vld [vmem:[%s1 + $0x60] sm:$0xff]
  %v48 = vld [vmem:[%s1 + $0x68] sm:$0xff]
  %v49 = vld [vmem:[%s1 + $0x70] sm:$0xff]
  %v50 = vld [vmem:[%s1 + $0x78] sm:$0xff]
  %v51 = vld [vmem:[%s32] sm:$0xff]
  %v52 = vld [vmem:[%s32 + $0x8] sm:$0xff]
  %v53 = vld [vmem:[%s32 + $0x10] sm:$0xff]
  %v54 = vld [vmem:[%s32 + $0x18] sm:$0xff]
  %v55 = vld [vmem:[%s32 + $0x20] sm:$0xff]
  %v56 = vld [vmem:[%s32 + $0x28] sm:$0xff]
  %v57 = vld [vmem:[%s32 + $0x30] sm:$0xff]
  %v58 = vld [vmem:[%s32 + $0x38] sm:$0xff]
  %v59 = vld [vmem:[%s32 + $0x40] sm:$0xff]
  %v60 = vld [vmem:[%s32 + $0x48] sm:$0xff]
  %v61 = vld [vmem:[%s32 + $0x50] sm:$0xff]
  %v62 = vld [vmem:[%s32 + $0x58] sm:$0xff]
  %v63 = vld [vmem:[%s32 + $0x60] sm:$0xff]
  %v64 = vld [vmem:[%s32 + $0x68] sm:$0xff]
  %v65 = vld [vmem:[%s32 + $0x70] sm:$0xff]
  %v66 = vld [vmem:[%s32 + $0x78] sm:$0xff]
  %vm67 = vcmask 261120
  %v69 = vsel %vm67, %v35, 0
  %v72 = vsel %vm67, %v36, 0
  %v75 = vsel %vm67, %v37, 0
  %v78 = vsel %vm67, %v38, 0
  %v81 = vsel %vm67, %v39, 0
  %v84 = vsel %vm67, %v40, 0
  %v87 = vsel %vm67, %v41, 0
  %v90 = vsel %vm67, %v42, 0
  %v93 = vsel %vm67, %v43, 0
  %v96 = vsel %vm67, %v44, 0
  %v99 = vsel %vm67, %v45, 0
  %v102 = vsel %vm67, %v46, 0
  %v105 = vsel %vm67, %v47, 0
  %v108 = vsel %vm67, %v48, 0
  %v111 = vsel %vm67, %v49, 0
  %v114 = vsel %vm67, %v50, 0
  %v117 = vsel %vm67, %v51, 0
  %v120 = vsel %vm67, %v52, 0
  %v123 = vsel %vm67, %v53, 0
  %v126 = vsel %vm67, %v54, 0
  %v129 = vsel %vm67, %v55, 0
  %v132 = vsel %vm67, %v56, 0
  %v135 = vsel %vm67, %v57, 0
  %v138 = vsel %vm67, %v58, 0
  %v141 = vsel %vm67, %v59, 0
  %v144 = vsel %vm67, %v60, 0
  %v147 = vsel %vm67, %v61, 0
  %v150 = vsel %vm67, %v62, 0
  %v153 = vsel %vm67, %v63, 0
  %v156 = vsel %vm67, %v64, 0
  %v159 = vsel %vm67, %v65, 0
  %v162 = vsel %vm67, %v66, 0
  %164 = vmatprep.subr.mxu0 0.0
  %165 = vmatpush1.xpose.msra.mxu0 %v162
  %166 = vmatprep.subr.mxu0 0.0
  %167 = vmatpush1.xpose.msra.mxu0 %v159
  %168 = vmatprep.subr.mxu0 0.0
  %169 = vmatpush1.xpose.msra.mxu0 %v156
  %170 = vmatprep.subr.mxu0 0.0
  %171 = vmatpush1.xpose.msra.mxu0 %v153
  %172 = vmatprep.subr.mxu0 0.0
  %173 = vmatpush1.xpose.msra.mxu0 %v150
  %174 = vmatprep.subr.mxu0 0.0
  %175 = vmatpush1.xpose.msra.mxu0 %v147
  %176 = vmatprep.subr.mxu0 0.0
  %177 = vmatpush1.xpose.msra.mxu0 %v144
  %178 = vmatprep.subr.mxu0 0.0
  %179 = vmatpush1.xpose.msra.mxu0 %v141
  %180 = vmatprep.subr.mxu0 0.0
  %181 = vmatpush1.xpose.msra.mxu0 %v138
  %182 = vmatprep.subr.mxu0 0.0
  %183 = vmatpush1.xpose.msra.mxu0 %v135
  %184 = vmatprep.subr.mxu0 0.0
  %185 = vmatpush1.xpose.msra.mxu0 %v132
  %186 = vmatprep.subr.mxu0 0.0
  %187 = vmatpush1.xpose.msra.mxu0 %v129
  %188 = vmatprep.subr.mxu0 0.0
  %189 = vmatpush1.xpose.msra.mxu0 %v126
  %190 = vmatprep.subr.mxu0 0.0
  %191 = vmatpush1.xpose.msra.mxu0 %v123
  %192 = vmatprep.subr.mxu0 0.0
  %193 = vmatpush1.xpose.msra.mxu0 %v120
  %194 = vmatprep.subr.mxu0 0.0
  %195 = vmatpush1.xpose.msra.mxu0 %v117
  %196 = vmatprep.subr.mxu0 0.0
  %197 = vmatpush2.xpose.msra.mxu0 0.0
  %198 = vmatprep.subr.mxu0 0.0
  %199 = vmatpush2.xpose.msra.mxu0 0.0
  %200 = vmatprep.subr.mxu0 0.0
  %201 = vmatpush2.xpose.msra.mxu0 0.0
  %202 = vmatprep.subr.mxu0 0.0
  %203 = vmatpush2.xpose.msra.mxu0 0.0
  %204 = vmatprep.subr.mxu0 0.0
  %205 = vmatpush2.xpose.msra.mxu0 0.0
  %206 = vmatprep.subr.mxu0 0.0
  %207 = vmatpush2.xpose.msra.mxu0 0.0
  %208 = vmatprep.subr.mxu0 0.0
  %209 = vmatpush2.xpose.msra.mxu0 0.0
  %210 = vmatprep.subr.mxu0 0.0
  %211 = vmatpush2.xpose.msra.mxu0 0.0
  %212 = vmatprep.subr.mxu0 0.0
  %213 = vmatpush2.xpose.msra.mxu0 0.0
  %214 = vmatprep.subr.mxu0 0.0
  %215 = vmatpush2.xpose.msra.mxu0 0.0
  %216 = vmatprep.subr.mxu0 0.0
  %217 = vmatpush2.xpose.msra.mxu0 0.0
  %218 = vmatprep.subr.mxu0 0.0
  %219 = vmatpush2.xpose.msra.mxu0 0.0
  %220 = vmatprep.subr.mxu0 0.0
  %221 = vmatpush2.xpose.msra.mxu0 0.0
  %222 = vmatprep.subr.mxu0 0.0
  %223 = vmatpush2.xpose.msra.mxu0 0.0
  %224 = vmatprep.subr.mxu0 0.0
  %225 = vmatpush2.xpose.msra.mxu0 0.0
  %226 = vmatprep.subr.mxu0 0.0
  %227 = vmatpush2.xpose.msra.mxu0 0.0
  %228 = vmatprep.mubr.f32.mxu0 0.0
  %229 = vmatmul.mubr.f32.gmra.mxu0 %v69
  %v230 = vpop.f32.mrf.mxu0
  %v231 = vadd.f32 0.0, %v230
  %v232 = vpop.f32.mrf.mxu0
  %233 = vmatprep.mubr.f32.mxu0 0.0
  %234 = vmatmul.mubr.f32.gmra.mxu0 %v72
  %v235 = vpop.f32.mrf.mxu0
  %v236 = vadd.f32 0.0, %v235
  %v237 = vpop.f32.mrf.mxu0
  %238 = vmatprep.mubr.f32.mxu0 0.0
  %239 = vmatmul.mubr.f32.gmra.mxu0 %v75
  %v240 = vpop.f32.mrf.mxu0
  %v241 = vadd.f32 0.0, %v240
  %v242 = vpop.f32.mrf.mxu0
  %243 = vmatprep.mubr.f32.mxu0 0.0
  %244 = vmatmul.mubr.f32.gmra.mxu0 %v78
  %v245 = vpop.f32.mrf.mxu0
  %v246 = vadd.f32 0.0, %v245
  %v247 = vpop.f32.mrf.mxu0
  %248 = vmatprep.mubr.f32.mxu0 0.0
  %249 = vmatmul.mubr.f32.gmra.mxu0 %v81
  %v250 = vpop.f32.mrf.mxu0
  %v251 = vadd.f32 0.0, %v250
  %v252 = vpop.f32.mrf.mxu0
  %253 = vmatprep.mubr.f32.mxu0 0.0
  %254 = vmatmul.mubr.f32.gmra.mxu0 %v84
  %v255 = vpop.f32.mrf.mxu0
  %v256 = vadd.f32 0.0, %v255
  %v257 = vpop.f32.mrf.mxu0
  %258 = vmatprep.mubr.f32.mxu0 0.0
  %259 = vmatmul.mubr.f32.gmra.mxu0 %v87
  %v260 = vpop.f32.mrf.mxu0
  %v261 = vadd.f32 0.0, %v260
  %v262 = vpop.f32.mrf.mxu0
  %263 = vmatprep.mubr.f32.mxu0 0.0
  %264 = vmatmul.mubr.f32.gmra.mxu0 %v90
  %v265 = vpop.f32.mrf.mxu0
  %v266 = vadd.f32 0.0, %v265
  %v267 = vpop.f32.mrf.mxu0
  %268 = vmatprep.mubr.f32.mxu0 0.0
  %269 = vmatmul.mubr.f32.gmra.mxu0 %v93
  %v270 = vpop.f32.mrf.mxu0
  %v271 = vadd.f32 0.0, %v270
  %v272 = vpop.f32.mrf.mxu0
  %273 = vmatprep.mubr.f32.mxu0 0.0
  %274 = vmatmul.mubr.f32.gmra.mxu0 %v96
  %v275 = vpop.f32.mrf.mxu0
  %v276 = vadd.f32 0.0, %v275
  %v277 = vpop.f32.mrf.mxu0
  %278 = vmatprep.mubr.f32.mxu0 0.0
  %279 = vmatmul.mubr.f32.gmra.mxu0 %v99
  %v280 = vpop.f32.mrf.mxu0
  %v281 = vadd.f32 0.0, %v280
  %v282 = vpop.f32.mrf.mxu0
  %283 = vmatprep.mubr.f32.mxu0 0.0
  %284 = vmatmul.mubr.f32.gmra.mxu0 %v102
  %v285 = vpop.f32.mrf.mxu0
  %v286 = vadd.f32 0.0, %v285
  %v287 = vpop.f32.mrf.mxu0
  %288 = vmatprep.mubr.f32.mxu0 0.0
  %289 = vmatmul.mubr.f32.gmra.mxu0 %v105
  %v290 = vpop.f32.mrf.mxu0
  %v291 = vadd.f32 0.0, %v290
  %v292 = vpop.f32.mrf.mxu0
  %293 = vmatprep.mubr.f32.mxu0 0.0
  %294 = vmatmul.mubr.f32.gmra.mxu0 %v108
  %v295 = vpop.f32.mrf.mxu0
  %v296 = vadd.f32 0.0, %v295
  %v297 = vpop.f32.mrf.mxu0
  %298 = vmatprep.mubr.f32.mxu0 0.0
  %299 = vmatmul.mubr.f32.gmra.mxu0 %v111
  %v300 = vpop.f32.mrf.mxu0
  %v301 = vadd.f32 0.0, %v300
  %v302 = vpop.f32.mrf.mxu0
  %303 = vmatprep.mubr.f32.mxu0 0.0
  %304 = vmatmul.mubr.f32.gmra.mxu0 %v114
  %v305 = vpop.f32.mrf.mxu0
  %v306 = vadd.f32 0.0, %v305
  %v307 = vpop.f32.mrf.mxu0
  %308 = vdwg.mxu0
  %p309 = scmp.eq.s32.totalorder 0, 0
  // Predicated region
  $region10: #{pu_model_forward.2} parent=0 // pred_check
    %p310 = pneg %p309
  $region11: #{pu_model_forward.2} parent=0 // pred_check_branch
    %312 = sbr.rel (%p310) target = $region13
  $region12: #{pu_model_forward.2} parent=0 // pred_region
    %vm313 = vcmask 7168
    %314 = vst.msk [vmem:[%s2] sm:$0xff] %vm313, 0.0
    %315 = vst.msk [vmem:[%s2 + $0x8] sm:$0xff] %vm313, 0.0
    %316 = vst.msk [vmem:[%s2 + $0x10] sm:$0xff] %vm313, 0.0
    %317 = vst.msk [vmem:[%s2 + $0x18] sm:$0xff] %vm313, 0.0
    %318 = vst.msk [vmem:[%s2 + $0x20] sm:$0xff] %vm313, 0.0
    %319 = vst.msk [vmem:[%s2 + $0x28] sm:$0xff] %vm313, 0.0
    %320 = vst.msk [vmem:[%s2 + $0x30] sm:$0xff] %vm313, 0.0
    %321 = vst.msk [vmem:[%s2 + $0x38] sm:$0xff] %vm313, 0.0
    %322 = vst.msk [vmem:[%s2 + $0x40] sm:$0xff] %vm313, 0.0
    %323 = vst.msk [vmem:[%s2 + $0x48] sm:$0xff] %vm313, 0.0
    %324 = vst.msk [vmem:[%s2 + $0x50] sm:$0xff] %vm313, 0.0
    %325 = vst.msk [vmem:[%s2 + $0x58] sm:$0xff] %vm313, 0.0
    %326 = vst.msk [vmem:[%s2 + $0x60] sm:$0xff] %vm313, 0.0
    %327 = vst.msk [vmem:[%s2 + $0x68] sm:$0xff] %vm313, 0.0
    %328 = vst.msk [vmem:[%s2 + $0x70] sm:$0xff] %vm313, 0.0
    %329 = vst.msk [vmem:[%s2 + $0x78] sm:$0xff] %vm313, 0.0
    %330 = vst.msk [vmem:[%s3] sm:$0xff] %vm313, 0.0
    %331 = vst.msk [vmem:[%s3 + $0x8] sm:$0xff] %vm313, 0.0
    %332 = vst.msk [vmem:[%s3 + $0x10] sm:$0xff] %vm313, 0.0
    %333 = vst.msk [vmem:[%s3 + $0x18] sm:$0xff] %vm313, 0.0
    %334 = vst.msk [vmem:[%s3 + $0x20] sm:$0xff] %vm313, 0.0
    %335 = vst.msk [vmem:[%s3 + $0x28] sm:$0xff] %vm313, 0.0
    %336 = vst.msk [vmem:[%s3 + $0x30] sm:$0xff] %vm313, 0.0
    %337 = vst.msk [vmem:[%s3 + $0x38] sm:$0xff] %vm313, 0.0
    %338 = vst.msk [vmem:[%s3 + $0x40] sm:$0xff] %vm313, 0.0
    %339 = vst.msk [vmem:[%s3 + $0x48] sm:$0xff] %vm313, 0.0
    %340 = vst.msk [vmem:[%s3 + $0x50] sm:$0xff] %vm313, 0.0
    %341 = vst.msk [vmem:[%s3 + $0x58] sm:$0xff] %vm313, 0.0
    %342 = vst.msk [vmem:[%s3 + $0x60] sm:$0xff] %vm313, 0.0
    %343 = vst.msk [vmem:[%s3 + $0x68] sm:$0xff] %vm313, 0.0
    %344 = vst.msk [vmem:[%s3 + $0x70] sm:$0xff] %vm313, 0.0
    %345 = vst.msk [vmem:[%s3 + $0x78] sm:$0xff] %vm313, 0.0
  $region13: #{pu_model_forward.2} parent=0 // pred_fallthru
    _
  %v346 = vld [vmem:[%s2] sm:$0xff]
  %v347 = vld [vmem:[%s2 + $0x8] sm:$0xff]
  %v348 = vld [vmem:[%s2 + $0x10] sm:$0xff]
  %v349 = vld [vmem:[%s2 + $0x18] sm:$0xff]
  %v350 = vld [vmem:[%s2 + $0x20] sm:$0xff]
  %v351 = vld [vmem:[%s2 + $0x28] sm:$0xff]
  %v352 = vld [vmem:[%s2 + $0x30] sm:$0xff]
  %v353 = vld [vmem:[%s2 + $0x38] sm:$0xff]
  %v354 = vld [vmem:[%s2 + $0x40] sm:$0xff]
  %v355 = vld [vmem:[%s2 + $0x48] sm:$0xff]
  %v356 = vld [vmem:[%s2 + $0x50] sm:$0xff]
  %v357 = vld [vmem:[%s2 + $0x58] sm:$0xff]
  %v358 = vld [vmem:[%s2 + $0x60] sm:$0xff]
  %v359 = vld [vmem:[%s2 + $0x68] sm:$0xff]
  %v360 = vld [vmem:[%s2 + $0x70] sm:$0xff]
  %v361 = vld [vmem:[%s2 + $0x78] sm:$0xff]
  %362 = vadd.xlane.f32.xlu0 %v231
  %v363 = vpop.xlane.xlu0 %362
  %364 = vadd.xlane.f32.xlu0 %v236
  %v365 = vpop.xlane.xlu0 %364
  %366 = vadd.xlane.f32.xlu0 %v241
  %v367 = vpop.xlane.xlu0 %366
  %368 = vadd.xlane.f32.xlu0 %v246
  %v369 = vpop.xlane.xlu0 %368
  %370 = vadd.xlane.f32.xlu0 %v251
  %v371 = vpop.xlane.xlu0 %370
  %372 = vadd.xlane.f32.xlu0 %v256
  %v373 = vpop.xlane.xlu0 %372
  %374 = vadd.xlane.f32.xlu0 %v261
  %v375 = vpop.xlane.xlu0 %374
  %376 = vadd.xlane.f32.xlu0 %v266
  %v377 = vpop.xlane.xlu0 %376
  %378 = vadd.xlane.f32.xlu0 %v271
  %v379 = vpop.xlane.xlu0 %378
  %380 = vadd.xlane.f32.xlu0 %v276
  %v381 = vpop.xlane.xlu0 %380
  %382 = vadd.xlane.f32.xlu0 %v281
  %v383 = vpop.xlane.xlu0 %382
  %384 = vadd.xlane.f32.xlu0 %v286
  %v385 = vpop.xlane.xlu0 %384
  %386 = vadd.xlane.f32.xlu0 %v291
  %v387 = vpop.xlane.xlu0 %386
  %388 = vadd.xlane.f32.xlu0 %v296
  %v389 = vpop.xlane.xlu0 %388
  %390 = vadd.xlane.f32.xlu0 %v301
  %v391 = vpop.xlane.xlu0 %390
  %392 = vadd.xlane.f32.xlu0 %v306
  %v393 = vpop.xlane.xlu0 %392
  %v394 = vadd.f32 %v346, %v363
  %v395 = vadd.f32 %v347, %v365
  %v396 = vadd.f32 %v348, %v367
  %v397 = vadd.f32 %v349, %v369
  %v398 = vadd.f32 %v350, %v371
  %v399 = vadd.f32 %v351, %v373
  %v400 = vadd.f32 %v352, %v375
  %v401 = vadd.f32 %v353, %v377
  %v402 = vadd.f32 %v354, %v379
  %v403 = vadd.f32 %v355, %v381
  %v404 = vadd.f32 %v356, %v383
  %v405 = vadd.f32 %v357, %v385
  %v406 = vadd.f32 %v358, %v387
  %v407 = vadd.f32 %v359, %v389
  %v408 = vadd.f32 %v360, %v391
  %v409 = vadd.f32 %v361, %v393
  %vm410 = vcmask 7168
  %411 = vst.msk [vmem:[%s2] sm:$0xff] %vm410, %v394
  %412 = vst.msk [vmem:[%s2 + $0x8] sm:$0xff] %vm410, %v395
  %413 = vst.msk [vmem:[%s2 + $0x10] sm:$0xff] %vm410, %v396
  %414 = vst.msk [vmem:[%s2 + $0x18] sm:$0xff] %vm410, %v397
  %415 = vst.msk [vmem:[%s2 + $0x20] sm:$0xff] %vm410, %v398
  %416 = vst.msk [vmem:[%s2 + $0x28] sm:$0xff] %vm410, %v399
  %417 = vst.msk [vmem:[%s2 + $0x30] sm:$0xff] %vm410, %v400
  %418 = vst.msk [vmem:[%s2 + $0x38] sm:$0xff] %vm410, %v401
  %419 = vst.msk [vmem:[%s2 + $0x40] sm:$0xff] %vm410, %v402
  %420 = vst.msk [vmem:[%s2 + $0x48] sm:$0xff] %vm410, %v403
  %421 = vst.msk [vmem:[%s2 + $0x50] sm:$0xff] %vm410, %v404
  %422 = vst.msk [vmem:[%s2 + $0x58] sm:$0xff] %vm410, %v405
  %423 = vst.msk [vmem:[%s2 + $0x60] sm:$0xff] %vm410, %v406
  %424 = vst.msk [vmem:[%s2 + $0x68] sm:$0xff] %vm410, %v407
  %425 = vst.msk [vmem:[%s2 + $0x70] sm:$0xff] %vm410, %v408
  %426 = vst.msk [vmem:[%s2 + $0x78] sm:$0xff] %vm410, %v409
  %v427 = vld [vmem:[%s3] sm:$0xff]
  %v428 = vld [vmem:[%s3 + $0x8] sm:$0xff]
  %v429 = vld [vmem:[%s3 + $0x10] sm:$0xff]
  %v430 = vld [vmem:[%s3 + $0x18] sm:$0xff]
  %v431 = vld [vmem:[%s3 + $0x20] sm:$0xff]
  %v432 = vld [vmem:[%s3 + $0x28] sm:$0xff]
  %v433 = vld [vmem:[%s3 + $0x30] sm:$0xff]
  %v434 = vld [vmem:[%s3 + $0x38] sm:$0xff]
  %v435 = vld [vmem:[%s3 + $0x40] sm:$0xff]
  %v436 = vld [vmem:[%s3 + $0x48] sm:$0xff]
  %v437 = vld [vmem:[%s3 + $0x50] sm:$0xff]
  %v438 = vld [vmem:[%s3 + $0x58] sm:$0xff]
  %v439 = vld [vmem:[%s3 + $0x60] sm:$0xff]
  %v440 = vld [vmem:[%s3 + $0x68] sm:$0xff]
  %v441 = vld [vmem:[%s3 + $0x70] sm:$0xff]
  %v442 = vld [vmem:[%s3 + $0x78] sm:$0xff]
  %v443 = vmul.f32 %v231, %v231
  %v444 = vmul.f32 %v236, %v236
  %v445 = vmul.f32 %v241, %v241
  %v446 = vmul.f32 %v246, %v246
  %v447 = vmul.f32 %v251, %v251
  %v448 = vmul.f32 %v256, %v256
  %v449 = vmul.f32 %v261, %v261
  %v450 = vmul.f32 %v266, %v266
  %v451 = vmul.f32 %v271, %v271
  %v452 = vmul.f32 %v276, %v276
  %v453 = vmul.f32 %v281, %v281
  %v454 = vmul.f32 %v286, %v286
  %v455 = vmul.f32 %v291, %v291
  %v456 = vmul.f32 %v296, %v296
  %v457 = vmul.f32 %v301, %v301
  %v458 = vmul.f32 %v306, %v306
  %459 = vadd.xlane.f32.xlu0 %v443
  %v460 = vpop.xlane.xlu0 %459
  %461 = vadd.xlane.f32.xlu0 %v444
  %v462 = vpop.xlane.xlu0 %461
  %463 = vadd.xlane.f32.xlu0 %v445
  %v464 = vpop.xlane.xlu0 %463
  %465 = vadd.xlane.f32.xlu0 %v446
  %v466 = vpop.xlane.xlu0 %465
  %467 = vadd.xlane.f32.xlu0 %v447
  %v468 = vpop.xlane.xlu0 %467
  %469 = vadd.xlane.f32.xlu0 %v448
  %v470 = vpop.xlane.xlu0 %469
  %471 = vadd.xlane.f32.xlu0 %v449
  %v472 = vpop.xlane.xlu0 %471
  %473 = vadd.xlane.f32.xlu0 %v450
  %v474 = vpop.xlane.xlu0 %473
  %475 = vadd.xlane.f32.xlu0 %v451
  %v476 = vpop.xlane.xlu0 %475
  %477 = vadd.xlane.f32.xlu0 %v452
  %v478 = vpop.xlane.xlu0 %477
  %479 = vadd.xlane.f32.xlu0 %v453
  %v480 = vpop.xlane.xlu0 %479
  %481 = vadd.xlane.f32.xlu0 %v454
  %v482 = vpop.xlane.xlu0 %481
  %483 = vadd.xlane.f32.xlu0 %v455
  %v484 = vpop.xlane.xlu0 %483
  %485 = vadd.xlane.f32.xlu0 %v456
  %v486 = vpop.xlane.xlu0 %485
  %487 = vadd.xlane.f32.xlu0 %v457
  %v488 = vpop.xlane.xlu0 %487
  %489 = vadd.xlane.f32.xlu0 %v458
  %v490 = vpop.xlane.xlu0 %489
  %v491 = vadd.f32 %v427, %v460
  %v492 = vadd.f32 %v428, %v462
  %v493 = vadd.f32 %v429, %v464
  %v494 = vadd.f32 %v430, %v466
  %v495 = vadd.f32 %v431, %v468
  %v496 = vadd.f32 %v432, %v470
  %v497 = vadd.f32 %v433, %v472
  %v498 = vadd.f32 %v434, %v474
  %v499 = vadd.f32 %v435, %v476
  %v500 = vadd.f32 %v436, %v478
  %v501 = vadd.f32 %v437, %v480
  %v502 = vadd.f32 %v438, %v482
  %v503 = vadd.f32 %v439, %v484
  %v504 = vadd.f32 %v440, %v486
  %v505 = vadd.f32 %v441, %v488
  %v506 = vadd.f32 %v442, %v490
  %507 = vst.msk [vmem:[%s3] sm:$0xff] %vm410, %v491
  %508 = vst.msk [vmem:[%s3 + $0x8] sm:$0xff] %vm410, %v492
  %509 = vst.msk [vmem:[%s3 + $0x10] sm:$0xff] %vm410, %v493
  %510 = vst.msk [vmem:[%s3 + $0x18] sm:$0xff] %vm410, %v494
  %511 = vst.msk [vmem:[%s3 + $0x20] sm:$0xff] %vm410, %v495
  %512 = vst.msk [vmem:[%s3 + $0x28] sm:$0xff] %vm410, %v496
  %513 = vst.msk [vmem:[%s3 + $0x30] sm:$0xff] %vm410, %v497
  %514 = vst.msk [vmem:[%s3 + $0x38] sm:$0xff] %vm410, %v498
  %515 = vst.msk [vmem:[%s3 + $0x40] sm:$0xff] %vm410, %v499
  %516 = vst.msk [vmem:[%s3 + $0x48] sm:$0xff] %vm410, %v500
  %517 = vst.msk [vmem:[%s3 + $0x50] sm:$0xff] %vm410, %v501
  %518 = vst.msk [vmem:[%s3 + $0x58] sm:$0xff] %vm410, %v502
  %519 = vst.msk [vmem:[%s3 + $0x60] sm:$0xff] %vm410, %v503
  %520 = vst.msk [vmem:[%s3 + $0x68] sm:$0xff] %vm410, %v504
  %521 = vst.msk [vmem:[%s3 + $0x70] sm:$0xff] %vm410, %v505
  %522 = vst.msk [vmem:[%s3 + $0x78] sm:$0xff] %vm410, %v506
  // Predicated region
  $region14: #{pu_model_forward.2} parent=0 // pred_check
    _
  $region15: #{pu_model_forward.2} parent=0 // pred_check_branch
    %524 = sbr.rel (0) target = $region17
  $region16: #{pu_model_forward.2} parent=0 // pred_region
    _
  $region17: #{pu_model_forward.2} parent=0 // pred_fallthru
    _
  // Predicated region
  $region18: #{pu_model_forward.2} parent=0 // pred_check
    _
  $region19: #{pu_model_forward.2} parent=0 // pred_check_branch
    %526 = sbr.rel (0) target = $region21
  $region20: #{pu_model_forward.2} parent=0 // pred_region
    _
  $region21: #{pu_model_forward.2} parent=0 // pred_fallthru
    _
  // Predicated region
  $region22: #{pu_model_forward.2} parent=0 // pred_check
    _
  $region23: #{pu_model_forward.2} parent=0 // pred_check_branch
    %528 = sbr.rel (0) target = $region25
  $region24: #{pu_model_forward.2} parent=0 // pred_region
    _
  $region25: #{pu_model_forward.2} parent=0 // pred_fallthru
    _
  // Predicated region
  $region26: #{pu_model_forward.2} parent=0 // pred_check
    _
  $region27: #{pu_model_forward.2} parent=0 // pred_check_branch
    %530 = sbr.rel (0) target = $region29
  $region28: #{pu_model_forward.2} parent=0 // pred_region
    _
  $region29: #{pu_model_forward.2} parent=0 // pred_fallthru
    _

// kernel: pu_model_forward.3
$region0: #{pu_model_forward.3}
  #allocation0 [shape = 'u32[]', space=smem, size = 0x4, offset = 0x4, fixed_abs, tag = 'smem constant byte address 0x4 - core index']
  #allocation1 [shape = 'u32[144,128]{1,0:T(1,128)}', space=vmem, size = 0x12000, scoped, tag = 'internal scratch']
  %s0 = inlined_call_operand.vmem [shape: f32[128,32], index: 0, kind: input, shape index: {}]
  %s1 = inlined_call_operand.vmem [shape: f32[128,32], index: 1, kind: input, shape index: {}]
  %s2 = inlined_call_operand.vmem [shape: f32[1,128,1], index: 2, kind: input, shape index: {}]
  %s3 = inlined_call_operand.vmem [shape: f32[1,128,1], index: 3, kind: input, shape index: {}]
  %s4 = inlined_call_operand.vmem [shape: f32[128,2], index: 4, kind: input, shape index: {}]
  %s5 = inlined_call_operand.vmem [shape: f32[3,128], index: 5, kind: input, shape index: {}]
  %s6 = inlined_call_operand.vmem [shape: f32[3,2], index: 6, kind: input, shape index: {}]
  %s7 = inlined_call_operand.vmem [shape: f32[1,2], index: 7, kind: input, shape index: {}]
  %s8 = inlined_call_operand.vmem [shape: f32[1,128], index: 8, kind: output, shape index: {}]
  %s9 = sld [smem:[#allocation0]]
  $region42: #{pu_model_forward.3} parent=0
    _
  %s11 = ssub.s32 1, %s9
  %s12 = scalar_select 0, %s11, %s9
  // Predicated region
  $region2: #{pu_model_forward.3} parent=0 // pred_check
    _
  $region3: #{pu_model_forward.3} parent=0 // pred_check_branch
    %14 = sbr.rel (0) target = $region5
  $region4: #{pu_model_forward.3} parent=0 // pred_region
    _
  $region5: #{pu_model_forward.3} parent=0 // pred_fallthru
    _
  // Predicated region
  $region6: #{pu_model_forward.3} parent=0 // pred_check
    _
  $region7: #{pu_model_forward.3} parent=0 // pred_check_branch
    %16 = sbr.rel (0) target = $region9
  $region8: #{pu_model_forward.3} parent=0 // pred_region
    _
  $region9: #{pu_model_forward.3} parent=0 // pred_fallthru
    _
  // Predicated region
  $region10: #{pu_model_forward.3} parent=0 // pred_check
    _
  $region11: #{pu_model_forward.3} parent=0 // pred_check_branch
    %18 = sbr.rel (0) target = $region13
  $region12: #{pu_model_forward.3} parent=0 // pred_region
    _
  $region13: #{pu_model_forward.3} parent=0 // pred_fallthru
    _
  // Predicated region
  $region14: #{pu_model_forward.3} parent=0 // pred_check
    _
  $region15: #{pu_model_forward.3} parent=0 // pred_check_branch
    %20 = sbr.rel (0) target = $region17
  $region16: #{pu_model_forward.3} parent=0 // pred_region
    _
  $region17: #{pu_model_forward.3} parent=0 // pred_fallthru
    _
  // Predicated region
  $region18: #{pu_model_forward.3} parent=0 // pred_check
    _
  $region19: #{pu_model_forward.3} parent=0 // pred_check_branch
    %22 = sbr.rel (0) target = $region21
  $region20: #{pu_model_forward.3} parent=0 // pred_region
    _
  $region21: #{pu_model_forward.3} parent=0 // pred_fallthru
    _
  // Predicated region
  $region22: #{pu_model_forward.3} parent=0 // pred_check
    _
  $region23: #{pu_model_forward.3} parent=0 // pred_check_branch
    %24 = sbr.rel (0) target = $region25
  $region24: #{pu_model_forward.3} parent=0 // pred_region
    _
  $region25: #{pu_model_forward.3} parent=0 // pred_fallthru
    _
  // Predicated region
  $region26: #{pu_model_forward.3} parent=0 // pred_check
    _
  $region27: #{pu_model_forward.3} parent=0 // pred_check_branch
    %26 = sbr.rel (0) target = $region29
  $region28: #{pu_model_forward.3} parent=0 // pred_region
    _
  $region29: #{pu_model_forward.3} parent=0 // pred_fallthru
    _
  // Predicated region
  $region30: #{pu_model_forward.3} parent=0 // pred_check
    _
  $region31: #{pu_model_forward.3} parent=0 // pred_check_branch
    %28 = sbr.rel (0) target = $region33
  $region32: #{pu_model_forward.3} parent=0 // pred_region
    _
  $region33: #{pu_model_forward.3} parent=0 // pred_fallthru
    _
  %v29 = vld [vmem:[%s7] sm:$0x1]
  %v30 = vld [vmem:[%s2] sm:$0xff]
  %v31 = vld [vmem:[%s2 + $0x8] sm:$0xff]
  %v32 = vld [vmem:[%s2 + $0x10] sm:$0xff]
  %v33 = vld [vmem:[%s2 + $0x18] sm:$0xff]
  %v34 = vld [vmem:[%s2 + $0x20] sm:$0xff]
  %v35 = vld [vmem:[%s2 + $0x28] sm:$0xff]
  %v36 = vld [vmem:[%s2 + $0x30] sm:$0xff]
  %v37 = vld [vmem:[%s2 + $0x38] sm:$0xff]
  %v38 = vld [vmem:[%s2 + $0x40] sm:$0xff]
  %v39 = vld [vmem:[%s2 + $0x48] sm:$0xff]
  %v40 = vld [vmem:[%s2 + $0x50] sm:$0xff]
  %v41 = vld [vmem:[%s2 + $0x58] sm:$0xff]
  %v42 = vld [vmem:[%s2 + $0x60] sm:$0xff]
  %v43 = vld [vmem:[%s2 + $0x68] sm:$0xff]
  %v44 = vld [vmem:[%s2 + $0x70] sm:$0xff]
  %v45 = vld [vmem:[%s2 + $0x78] sm:$0xff]
  %v46 = vadd.f32 %v30, 0.0
  %v47 = vadd.f32 %v31, 0.0
  %v48 = vadd.f32 %v32, 0.0
  %v49 = vadd.f32 %v33, 0.0
  %v50 = vadd.f32 %v34, 0.0
  %v51 = vadd.f32 %v35, 0.0
  %v52 = vadd.f32 %v36, 0.0
  %v53 = vadd.f32 %v37, 0.0
  %v54 = vadd.f32 %v38, 0.0
  %v55 = vadd.f32 %v39, 0.0
  %v56 = vadd.f32 %v40, 0.0
  %v57 = vadd.f32 %v41, 0.0
  %v58 = vadd.f32 %v42, 0.0
  %v59 = vadd.f32 %v43, 0.0
  %v60 = vadd.f32 %v44, 0.0
  %v61 = vadd.f32 %v45, 0.0
  %v62 = vld [vmem:[%s3] sm:$0xff]
  %v63 = vld [vmem:[%s3 + $0x8] sm:$0xff]
  %v64 = vld [vmem:[%s3 + $0x10] sm:$0xff]
  %v65 = vld [vmem:[%s3 + $0x18] sm:$0xff]
  %v66 = vld [vmem:[%s3 + $0x20] sm:$0xff]
  %v67 = vld [vmem:[%s3 + $0x28] sm:$0xff]
  %v68 = vld [vmem:[%s3 + $0x30] sm:$0xff]
  %v69 = vld [vmem:[%s3 + $0x38] sm:$0xff]
  %v70 = vld [vmem:[%s3 + $0x40] sm:$0xff]
  %v71 = vld [vmem:[%s3 + $0x48] sm:$0xff]
  %v72 = vld [vmem:[%s3 + $0x50] sm:$0xff]
  %v73 = vld [vmem:[%s3 + $0x58] sm:$0xff]
  %v74 = vld [vmem:[%s3 + $0x60] sm:$0xff]
  %v75 = vld [vmem:[%s3 + $0x68] sm:$0xff]
  %v76 = vld [vmem:[%s3 + $0x70] sm:$0xff]
  %v77 = vld [vmem:[%s3 + $0x78] sm:$0xff]
  %v78 = vadd.f32 %v62, 0.0
  %v79 = vadd.f32 %v63, 0.0
  %v80 = vadd.f32 %v64, 0.0
  %v81 = vadd.f32 %v65, 0.0
  %v82 = vadd.f32 %v66, 0.0
  %v83 = vadd.f32 %v67, 0.0
  %v84 = vadd.f32 %v68, 0.0
  %v85 = vadd.f32 %v69, 0.0
  %v86 = vadd.f32 %v70, 0.0
  %v87 = vadd.f32 %v71, 0.0
  %v88 = vadd.f32 %v72, 0.0
  %v89 = vadd.f32 %v73, 0.0
  %v90 = vadd.f32 %v74, 0.0
  %v91 = vadd.f32 %v75, 0.0
  %v92 = vadd.f32 %v76, 0.0
  %v93 = vadd.f32 %v77, 0.0
  %v95 = vlaneseq
  %v96 = vshrl.u32 %v95, 7
  %v97 = vsub.s32 0, %v96
  %v98 = vrot.slane %v29, %v97
  %99 = vrot.lane.b32.xlu0 %v98, 127
  %v100 = vpop.permute.xlu0 %99
  %v102 = vmul.f32 %v46, %v100
  %v103 = vmul.f32 %v47, %v100
  %v104 = vmul.f32 %v48, %v100
  %v105 = vmul.f32 %v49, %v100
  %v106 = vmul.f32 %v50, %v100
  %v107 = vmul.f32 %v51, %v100
  %v108 = vmul.f32 %v52, %v100
  %v109 = vmul.f32 %v53, %v100
  %v110 = vmul.f32 %v54, %v100
  %v111 = vmul.f32 %v55, %v100
  %v112 = vmul.f32 %v56, %v100
  %v113 = vmul.f32 %v57, %v100
  %v114 = vmul.f32 %v58, %v100
  %v115 = vmul.f32 %v59, %v100
  %v116 = vmul.f32 %v60, %v100
  %v117 = vmul.f32 %v61, %v100
  %v118 = vmul.f32 %v78, %v100
  %v119 = vmul.f32 %v79, %v100
  %v120 = vmul.f32 %v80, %v100
  %v121 = vmul.f32 %v81, %v100
  %v122 = vmul.f32 %v82, %v100
  %v123 = vmul.f32 %v83, %v100
  %v124 = vmul.f32 %v84, %v100
  %v125 = vmul.f32 %v85, %v100
  %v126 = vmul.f32 %v86, %v100
  %v127 = vmul.f32 %v87, %v100
  %v128 = vmul.f32 %v88, %v100
  %v129 = vmul.f32 %v89, %v100
  %v130 = vmul.f32 %v90, %v100
  %v131 = vmul.f32 %v91, %v100
  %v132 = vmul.f32 %v92, %v100
  %v133 = vmul.f32 %v93, %v100
  %v134 = vmul.f32 %v102, %v102
  %v135 = vmul.f32 %v103, %v103
  %v136 = vmul.f32 %v104, %v104
  %v137 = vmul.f32 %v105, %v105
  %v138 = vmul.f32 %v106, %v106
  %v139 = vmul.f32 %v107, %v107
  %v140 = vmul.f32 %v108, %v108
  %v141 = vmul.f32 %v109, %v109
  %v142 = vmul.f32 %v110, %v110
  %v143 = vmul.f32 %v111, %v111
  %v144 = vmul.f32 %v112, %v112
  %v145 = vmul.f32 %v113, %v113
  %v146 = vmul.f32 %v114, %v114
  %v147 = vmul.f32 %v115, %v115
  %v148 = vmul.f32 %v116, %v116
  %v149 = vmul.f32 %v117, %v117
  %v150 = vsub.f32 %v118, %v134
  %v151 = vsub.f32 %v119, %v135
  %v152 = vsub.f32 %v120, %v136
  %v153 = vsub.f32 %v121, %v137
  %v154 = vsub.f32 %v122, %v138
  %v155 = vsub.f32 %v123, %v139
  %v156 = vsub.f32 %v124, %v140
  %v157 = vsub.f32 %v125, %v141
  %v158 = vsub.f32 %v126, %v142
  %v159 = vsub.f32 %v127, %v143
  %v160 = vsub.f32 %v128, %v144
  %v161 = vsub.f32 %v129, %v145
  %v162 = vsub.f32 %v130, %v146
  %v163 = vsub.f32 %v131, %v147
  %v164 = vsub.f32 %v132, %v148
  %v165 = vsub.f32 %v133, %v149
  %v166 = vmax.f32 %v150, 0.0
  %v167 = vmax.f32 %v151, 0.0
  %v168 = vmax.f32 %v152, 0.0
  %v169 = vmax.f32 %v153, 0.0
  %v170 = vmax.f32 %v154, 0.0
  %v171 = vmax.f32 %v155, 0.0
  %v172 = vmax.f32 %v156, 0.0
  %v173 = vmax.f32 %v157, 0.0
  %v174 = vmax.f32 %v158, 0.0
  %v175 = vmax.f32 %v159, 0.0
  %v176 = vmax.f32 %v160, 0.0
  %v177 = vmax.f32 %v161, 0.0
  %v178 = vmax.f32 %v162, 0.0
  %v179 = vmax.f32 %v163, 0.0
  %v180 = vmax.f32 %v164, 0.0
  %v181 = vmax.f32 %v165, 0.0
  %v182 = vadd.f32 %v166, 1e-05
  %v183 = vadd.f32 %v167, 1e-05
  %v184 = vadd.f32 %v168, 1e-05
  %v185 = vadd.f32 %v169, 1e-05
  %v186 = vadd.f32 %v170, 1e-05
  %v187 = vadd.f32 %v171, 1e-05
  %v188 = vadd.f32 %v172, 1e-05
  %v189 = vadd.f32 %v173, 1e-05
  %v190 = vadd.f32 %v174, 1e-05
  %v191 = vadd.f32 %v175, 1e-05
  %v192 = vadd.f32 %v176, 1e-05
  %v193 = vadd.f32 %v177, 1e-05
  %v194 = vadd.f32 %v178, 1e-05
  %v195 = vadd.f32 %v179, 1e-05
  %v196 = vadd.f32 %v180, 1e-05
  %v197 = vadd.f32 %v181, 1e-05
  %v198 = vrsqrt.pop %v182
  %v199 = vrsqrt.pop %v183
  %v200 = vrsqrt.pop %v184
  %v201 = vrsqrt.pop %v185
  %v202 = vrsqrt.pop %v186
  %v203 = vrsqrt.pop %v187
  %v204 = vrsqrt.pop %v188
  %v205 = vrsqrt.pop %v189
  %v206 = vrsqrt.pop %v190
  %v207 = vrsqrt.pop %v191
  %v208 = vrsqrt.pop %v192
  %v209 = vrsqrt.pop %v193
  %v210 = vrsqrt.pop %v194
  %v211 = vrsqrt.pop %v195
  %v212 = vrsqrt.pop %v196
  %v213 = vrsqrt.pop %v197
  %v214 = vld [vmem:[%s4] sm:$0xff]
  %v215 = vld [vmem:[%s4 + $0x8] sm:$0xff]
  %v216 = vld [vmem:[%s4 + $0x10] sm:$0xff]
  %v217 = vld [vmem:[%s4 + $0x18] sm:$0xff]
  %v218 = vld [vmem:[%s4 + $0x20] sm:$0xff]
  %v219 = vld [vmem:[%s4 + $0x28] sm:$0xff]
  %v220 = vld [vmem:[%s4 + $0x30] sm:$0xff]
  %v221 = vld [vmem:[%s4 + $0x38] sm:$0xff]
  %v222 = vld [vmem:[%s4 + $0x40] sm:$0xff]
  %v223 = vld [vmem:[%s4 + $0x48] sm:$0xff]
  %v224 = vld [vmem:[%s4 + $0x50] sm:$0xff]
  %v225 = vld [vmem:[%s4 + $0x58] sm:$0xff]
  %v226 = vld [vmem:[%s4 + $0x60] sm:$0xff]
  %v227 = vld [vmem:[%s4 + $0x68] sm:$0xff]
  %v228 = vld [vmem:[%s4 + $0x70] sm:$0xff]
  %v229 = vld [vmem:[%s4 + $0x78] sm:$0xff]
  %v230 = vmul.f32 %v214, %v198
  %v231 = vmul.f32 %v215, %v199
  %v232 = vmul.f32 %v216, %v200
  %v233 = vmul.f32 %v217, %v201
  %v234 = vmul.f32 %v218, %v202
  %v235 = vmul.f32 %v219, %v203
  %v236 = vmul.f32 %v220, %v204
  %v237 = vmul.f32 %v221, %v205
  %v238 = vmul.f32 %v222, %v206
  %v239 = vmul.f32 %v223, %v207
  %v240 = vmul.f32 %v224, %v208
  %v241 = vmul.f32 %v225, %v209
  %v242 = vmul.f32 %v226, %v210
  %v243 = vmul.f32 %v227, %v211
  %v244 = vmul.f32 %v228, %v212
  %v245 = vmul.f32 %v229, %v213
  %v246 = vmul.f32 %v102, %v230
  %v247 = vmul.f32 %v103, %v231
  %v248 = vmul.f32 %v104, %v232
  %v249 = vmul.f32 %v105, %v233
  %v250 = vmul.f32 %v106, %v234
  %v251 = vmul.f32 %v107, %v235
  %v252 = vmul.f32 %v108, %v236
  %v253 = vmul.f32 %v109, %v237
  %v254 = vmul.f32 %v110, %v238
  %v255 = vmul.f32 %v111, %v239
  %v256 = vmul.f32 %v112, %v240
  %v257 = vmul.f32 %v113, %v241
  %v258 = vmul.f32 %v114, %v242
  %v259 = vmul.f32 %v115, %v243
  %v260 = vmul.f32 %v116, %v244
  %v261 = vmul.f32 %v117, %v245
  %278 = vrot.lane.b32.xlu0 %v246, 1
  %v279 = vpop.permute.xlu0 %278
  %280 = vrot.lane.b32.xlu0 %v247, 1
  %v281 = vpop.permute.xlu0 %280
  %282 = vrot.lane.b32.xlu0 %v248, 1
  %v283 = vpop.permute.xlu0 %282
  %284 = vrot.lane.b32.xlu0 %v249, 1
  %v285 = vpop.permute.xlu0 %284
  %286 = vrot.lane.b32.xlu0 %v250, 1
  %v287 = vpop.permute.xlu0 %286
  %288 = vrot.lane.b32.xlu0 %v251, 1
  %v289 = vpop.permute.xlu0 %288
  %290 = vrot.lane.b32.xlu0 %v252, 1
  %v291 = vpop.permute.xlu0 %290
  %292 = vrot.lane.b32.xlu0 %v253, 1
  %v293 = vpop.permute.xlu0 %292
  %294 = vrot.lane.b32.xlu0 %v254, 1
  %v295 = vpop.permute.xlu0 %294
  %296 = vrot.lane.b32.xlu0 %v255, 1
  %v297 = vpop.permute.xlu0 %296
  %298 = vrot.lane.b32.xlu0 %v256, 1
  %v299 = vpop.permute.xlu0 %298
  %300 = vrot.lane.b32.xlu0 %v257, 1
  %v301 = vpop.permute.xlu0 %300
  %302 = vrot.lane.b32.xlu0 %v258, 1
  %v303 = vpop.permute.xlu0 %302
  %304 = vrot.lane.b32.xlu0 %v259, 1
  %v305 = vpop.permute.xlu0 %304
  %306 = vrot.lane.b32.xlu0 %v260, 1
  %v307 = vpop.permute.xlu0 %306
  %308 = vrot.lane.b32.xlu0 %v261, 1
  %v309 = vpop.permute.xlu0 %308
  %v326 = vsub.f32 %v214, %v279
  %v327 = vsub.f32 %v215, %v281
  %v328 = vsub.f32 %v216, %v283
  %v329 = vsub.f32 %v217, %v285
  %v330 = vsub.f32 %v218, %v287
  %v331 = vsub.f32 %v219, %v289
  %v332 = vsub.f32 %v220, %v291
  %v333 = vsub.f32 %v221, %v293
  %v334 = vsub.f32 %v222, %v295
  %v335 = vsub.f32 %v223, %v297
  %v336 = vsub.f32 %v224, %v299
  %v337 = vsub.f32 %v225, %v301
  %v338 = vsub.f32 %v226, %v303
  %v339 = vsub.f32 %v227, %v305
  %v340 = vsub.f32 %v228, %v307
  %v341 = vsub.f32 %v229, %v309
  %v342 = vld [vmem:[%s1] sm:$0xff]
  %v343 = vld [vmem:[%s1 + $0x8] sm:$0xff]
  %v344 = vld [vmem:[%s1 + $0x10] sm:$0xff]
  %v345 = vld [vmem:[%s1 + $0x18] sm:$0xff]
  %v346 = vld [vmem:[%s1 + $0x20] sm:$0xff]
  %v347 = vld [vmem:[%s1 + $0x28] sm:$0xff]
  %v348 = vld [vmem:[%s1 + $0x30] sm:$0xff]
  %v349 = vld [vmem:[%s1 + $0x38] sm:$0xff]
  %v350 = vld [vmem:[%s1 + $0x40] sm:$0xff]
  %v351 = vld [vmem:[%s1 + $0x48] sm:$0xff]
  %v352 = vld [vmem:[%s1 + $0x50] sm:$0xff]
  %v353 = vld [vmem:[%s1 + $0x58] sm:$0xff]
  %v354 = vld [vmem:[%s1 + $0x60] sm:$0xff]
  %v355 = vld [vmem:[%s1 + $0x68] sm:$0xff]
  %v356 = vld [vmem:[%s1 + $0x70] sm:$0xff]
  %v357 = vld [vmem:[%s1 + $0x78] sm:$0xff]
  %359 = vset.pattern.permute.xlu0 0
  %360 = vperm.xlu0 %359, %v230
  %v361 = vpop.permute.xlu0 %360
  %364 = vset.pattern.permute.xlu0 0
  %365 = vperm.xlu0 %364, %v231
  %v366 = vpop.permute.xlu0 %365
  %369 = vset.pattern.permute.xlu0 0
  %370 = vperm.xlu0 %369, %v232
  %v371 = vpop.permute.xlu0 %370
  %374 = vset.pattern.permute.xlu0 0
  %375 = vperm.xlu0 %374, %v233
  %v376 = vpop.permute.xlu0 %375
  %379 = vset.pattern.permute.xlu0 0
  %380 = vperm.xlu0 %379, %v234
  %v381 = vpop.permute.xlu0 %380
  %384 = vset.pattern.permute.xlu0 0
  %385 = vperm.xlu0 %384, %v235
  %v386 = vpop.permute.xlu0 %385
  %389 = vset.pattern.permute.xlu0 0
  %390 = vperm.xlu0 %389, %v236
  %v391 = vpop.permute.xlu0 %390
  %394 = vset.pattern.permute.xlu0 0
  %395 = vperm.xlu0 %394, %v237
  %v396 = vpop.permute.xlu0 %395
  %399 = vset.pattern.permute.xlu0 0
  %400 = vperm.xlu0 %399, %v238
  %v401 = vpop.permute.xlu0 %400
  %404 = vset.pattern.permute.xlu0 0
  %405 = vperm.xlu0 %404, %v239
  %v406 = vpop.permute.xlu0 %405
  %409 = vset.pattern.permute.xlu0 0
  %410 = vperm.xlu0 %409, %v240
  %v411 = vpop.permute.xlu0 %410
  %414 = vset.pattern.permute.xlu0 0
  %415 = vperm.xlu0 %414, %v241
  %v416 = vpop.permute.xlu0 %415
  %419 = vset.pattern.permute.xlu0 0
  %420 = vperm.xlu0 %419, %v242
  %v421 = vpop.permute.xlu0 %420
  %424 = vset.pattern.permute.xlu0 0
  %425 = vperm.xlu0 %424, %v243
  %v426 = vpop.permute.xlu0 %425
  %429 = vset.pattern.permute.xlu0 0
  %430 = vperm.xlu0 %429, %v244
  %v431 = vpop.permute.xlu0 %430
  %434 = vset.pattern.permute.xlu0 0
  %435 = vperm.xlu0 %434, %v245
  %v436 = vpop.permute.xlu0 %435
  %v438 = vmul.f32 %v342, %v361
  %v439 = vmul.f32 %v343, %v366
  %v440 = vmul.f32 %v344, %v371
  %v441 = vmul.f32 %v345, %v376
  %v442 = vmul.f32 %v346, %v381
  %v443 = vmul.f32 %v347, %v386
  %v444 = vmul.f32 %v348, %v391
  %v445 = vmul.f32 %v349, %v396
  %v446 = vmul.f32 %v350, %v401
  %v447 = vmul.f32 %v351, %v406
  %v448 = vmul.f32 %v352, %v411
  %v449 = vmul.f32 %v353, %v416
  %v450 = vmul.f32 %v354, %v421
  %v451 = vmul.f32 %v355, %v426
  %v452 = vmul.f32 %v356, %v431
  %v453 = vmul.f32 %v357, %v436
  %v454 = vld [vmem:[%s0] sm:$0xff]
  %v455 = vld [vmem:[%s0 + $0x8] sm:$0xff]
  %v456 = vld [vmem:[%s0 + $0x10] sm:$0xff]
  %v457 = vld [vmem:[%s0 + $0x18] sm:$0xff]
  %v458 = vld [vmem:[%s0 + $0x20] sm:$0xff]
  %v459 = vld [vmem:[%s0 + $0x28] sm:$0xff]
  %v460 = vld [vmem:[%s0 + $0x30] sm:$0xff]
  %v461 = vld [vmem:[%s0 + $0x38] sm:$0xff]
  %v462 = vld [vmem:[%s0 + $0x40] sm:$0xff]
  %v463 = vld [vmem:[%s0 + $0x48] sm:$0xff]
  %v464 = vld [vmem:[%s0 + $0x50] sm:$0xff]
  %v465 = vld [vmem:[%s0 + $0x58] sm:$0xff]
  %v466 = vld [vmem:[%s0 + $0x60] sm:$0xff]
  %v467 = vld [vmem:[%s0 + $0x68] sm:$0xff]
  %v468 = vld [vmem:[%s0 + $0x70] sm:$0xff]
  %v469 = vld [vmem:[%s0 + $0x78] sm:$0xff]
  %vm470 = vcmask 261120
  %v472 = vsel %vm470, %v438, 0
  %v475 = vsel %vm470, %v439, 0
  %v478 = vsel %vm470, %v440, 0
  %v481 = vsel %vm470, %v441, 0
  %v484 = vsel %vm470, %v442, 0
  %v487 = vsel %vm470, %v443, 0
  %v490 = vsel %vm470, %v444, 0
  %v493 = vsel %vm470, %v445, 0
  %v496 = vsel %vm470, %v446, 0
  %v499 = vsel %vm470, %v447, 0
  %v502 = vsel %vm470, %v448, 0
  %v505 = vsel %vm470, %v449, 0
  %v508 = vsel %vm470, %v450, 0
  %v511 = vsel %vm470, %v451, 0
  %v514 = vsel %vm470, %v452, 0
  %v517 = vsel %vm470, %v453, 0
  %v520 = vsel %vm470, %v454, 0
  %v523 = vsel %vm470, %v455, 0
  %v526 = vsel %vm470, %v456, 0
  %v529 = vsel %vm470, %v457, 0
  %v532 = vsel %vm470, %v458, 0
  %v535 = vsel %vm470, %v459, 0
  %v538 = vsel %vm470, %v460, 0
  %v541 = vsel %vm470, %v461, 0
  %v544 = vsel %vm470, %v462, 0
  %v547 = vsel %vm470, %v463, 0
  %v550 = vsel %vm470, %v464, 0
  %v553 = vsel %vm470, %v465, 0
  %v556 = vsel %vm470, %v466, 0
  %v559 = vsel %vm470, %v467, 0
  %v562 = vsel %vm470, %v468, 0
  %v565 = vsel %vm470, %v469, 0
  %567 = vmatprep.subr.mxu0 0.0
  %568 = vmatpush1.xpose.msra.mxu0 %v565
  %569 = vmatprep.subr.mxu0 0.0
  %570 = vmatpush1.xpose.msra.mxu0 %v562
  %571 = vmatprep.subr.mxu0 0.0
  %572 = vmatpush1.xpose.msra.mxu0 %v559
  %573 = vmatprep.subr.mxu0 0.0
  %574 = vmatpush1.xpose.msra.mxu0 %v556
  %575 = vmatprep.subr.mxu0 0.0
  %576 = vmatpush1.xpose.msra.mxu0 %v553
  %577 = vmatprep.subr.mxu0 0.0
  %578 = vmatpush1.xpose.msra.mxu0 %v550
  %579 = vmatprep.subr.mxu0 0.0
  %580 = vmatpush1.xpose.msra.mxu0 %v547
  %581 = vmatprep.subr.mxu0 0.0
  %582 = vmatpush1.xpose.msra.mxu0 %v544
  %583 = vmatprep.subr.mxu0 0.0
  %584 = vmatpush1.xpose.msra.mxu0 %v541
  %585 = vmatprep.subr.mxu0 0.0
  %586 = vmatpush1.xpose.msra.mxu0 %v538
  %587 = vmatprep.subr.mxu0 0.0
  %588 = vmatpush1.xpose.msra.mxu0 %v535
  %589 = vmatprep.subr.mxu0 0.0
  %590 = vmatpush1.xpose.msra.mxu0 %v532
  %591 = vmatprep.subr.mxu0 0.0
  %592 = vmatpush1.xpose.msra.mxu0 %v529
  %593 = vmatprep.subr.mxu0 0.0
  %594 = vmatpush1.xpose.msra.mxu0 %v526
  %595 = vmatprep.subr.mxu0 0.0
  %596 = vmatpush1.xpose.msra.mxu0 %v523
  %597 = vmatprep.subr.mxu0 0.0
  %598 = vmatpush1.xpose.msra.mxu0 %v520
  %599 = vmatprep.subr.mxu0 0.0
  %600 = vmatpush2.xpose.msra.mxu0 0.0
  %601 = vmatprep.subr.mxu0 0.0
  %602 = vmatpush2.xpose.msra.mxu0 0.0
  %603 = vmatprep.subr.mxu0 0.0
  %604 = vmatpush2.xpose.msra.mxu0 0.0
  %605 = vmatprep.subr.mxu0 0.0
  %606 = vmatpush2.xpose.msra.mxu0 0.0
  %607 = vmatprep.subr.mxu0 0.0
  %608 = vmatpush2.xpose.msra.mxu0 0.0
  %609 = vmatprep.subr.mxu0 0.0
  %610 = vmatpush2.xpose.msra.mxu0 0.0
  %611 = vmatprep.subr.mxu0 0.0
  %612 = vmatpush2.xpose.msra.mxu0 0.0
  %613 = vmatprep.subr.mxu0 0.0
  %614 = vmatpush2.xpose.msra.mxu0 0.0
  %615 = vmatprep.subr.mxu0 0.0
  %616 = vmatpush2.xpose.msra.mxu0 0.0
  %617 = vmatprep.subr.mxu0 0.0
  %618 = vmatpush2.xpose.msra.mxu0 0.0
  %619 = vmatprep.subr.mxu0 0.0
  %620 = vmatpush2.xpose.msra.mxu0 0.0
  %621 = vmatprep.subr.mxu0 0.0
  %622 = vmatpush2.xpose.msra.mxu0 0.0
  %623 = vmatprep.subr.mxu0 0.0
  %624 = vmatpush2.xpose.msra.mxu0 0.0
  %625 = vmatprep.subr.mxu0 0.0
  %626 = vmatpush2.xpose.msra.mxu0 0.0
  %627 = vmatprep.subr.mxu0 0.0
  %628 = vmatpush2.xpose.msra.mxu0 0.0
  %629 = vmatprep.subr.mxu0 0.0
  %630 = vmatpush2.xpose.msra.mxu0 0.0
  %631 = vmatprep.mubr.f32.mxu0 0.0
  %632 = vmatmul.mubr.f32.gmra.mxu0 %v472
  %v633 = vpop.f32.mrf.mxu0
  %v634 = vadd.f32 0.0, %v633
  %v635 = vpop.f32.mrf.mxu0
  %636 = vmatprep.mubr.f32.mxu0 0.0
  %637 = vmatmul.mubr.f32.gmra.mxu0 %v475
  %v638 = vpop.f32.mrf.mxu0
  %v639 = vadd.f32 0.0, %v638
  %v640 = vpop.f32.mrf.mxu0
  %641 = vmatprep.mubr.f32.mxu0 0.0
  %642 = vmatmul.mubr.f32.gmra.mxu0 %v478
  %v643 = vpop.f32.mrf.mxu0
  %v644 = vadd.f32 0.0, %v643
  %v645 = vpop.f32.mrf.mxu0
  %646 = vmatprep.mubr.f32.mxu0 0.0
  %647 = vmatmul.mubr.f32.gmra.mxu0 %v481
  %v648 = vpop.f32.mrf.mxu0
  %v649 = vadd.f32 0.0, %v648
  %v650 = vpop.f32.mrf.mxu0
  %651 = vmatprep.mubr.f32.mxu0 0.0
  %652 = vmatmul.mubr.f32.gmra.mxu0 %v484
  %v653 = vpop.f32.mrf.mxu0
  %v654 = vadd.f32 0.0, %v653
  %v655 = vpop.f32.mrf.mxu0
  %656 = vmatprep.mubr.f32.mxu0 0.0
  %657 = vmatmul.mubr.f32.gmra.mxu0 %v487
  %v658 = vpop.f32.mrf.mxu0
  %v659 = vadd.f32 0.0, %v658
  %v660 = vpop.f32.mrf.mxu0
  %661 = vmatprep.mubr.f32.mxu0 0.0
  %662 = vmatmul.mubr.f32.gmra.mxu0 %v490
  %v663 = vpop.f32.mrf.mxu0
  %v664 = vadd.f32 0.0, %v663
  %v665 = vpop.f32.mrf.mxu0
  %666 = vmatprep.mubr.f32.mxu0 0.0
  %667 = vmatmul.mubr.f32.gmra.mxu0 %v493
  %v668 = vpop.f32.mrf.mxu0
  %v669 = vadd.f32 0.0, %v668
  %v670 = vpop.f32.mrf.mxu0
  %671 = vmatprep.mubr.f32.mxu0 0.0
  %672 = vmatmul.mubr.f32.gmra.mxu0 %v496
  %v673 = vpop.f32.mrf.mxu0
  %v674 = vadd.f32 0.0, %v673
  %v675 = vpop.f32.mrf.mxu0
  %676 = vmatprep.mubr.f32.mxu0 0.0
  %677 = vmatmul.mubr.f32.gmra.mxu0 %v499
  %v678 = vpop.f32.mrf.mxu0
  %v679 = vadd.f32 0.0, %v678
  %v680 = vpop.f32.mrf.mxu0
  %681 = vmatprep.mubr.f32.mxu0 0.0
  %682 = vmatmul.mubr.f32.gmra.mxu0 %v502
  %v683 = vpop.f32.mrf.mxu0
  %v684 = vadd.f32 0.0, %v683
  %v685 = vpop.f32.mrf.mxu0
  %686 = vmatprep.mubr.f32.mxu0 0.0
  %687 = vmatmul.mubr.f32.gmra.mxu0 %v505
  %v688 = vpop.f32.mrf.mxu0
  %v689 = vadd.f32 0.0, %v688
  %v690 = vpop.f32.mrf.mxu0
  %691 = vmatprep.mubr.f32.mxu0 0.0
  %692 = vmatmul.mubr.f32.gmra.mxu0 %v508
  %v693 = vpop.f32.mrf.mxu0
  %v694 = vadd.f32 0.0, %v693
  %v695 = vpop.f32.mrf.mxu0
  %696 = vmatprep.mubr.f32.mxu0 0.0
  %697 = vmatmul.mubr.f32.gmra.mxu0 %v511
  %v698 = vpop.f32.mrf.mxu0
  %v699 = vadd.f32 0.0, %v698
  %v700 = vpop.f32.mrf.mxu0
  %701 = vmatprep.mubr.f32.mxu0 0.0
  %702 = vmatmul.mubr.f32.gmra.mxu0 %v514
  %v703 = vpop.f32.mrf.mxu0
  %v704 = vadd.f32 0.0, %v703
  %v705 = vpop.f32.mrf.mxu0
  %706 = vmatprep.mubr.f32.mxu0 0.0
  %707 = vmatmul.mubr.f32.gmra.mxu0 %v517
  %v708 = vpop.f32.mrf.mxu0
  %v709 = vadd.f32 0.0, %v708
  %v710 = vpop.f32.mrf.mxu0
  %711 = vdwg.mxu0
  %v712 = vld [vmem:[%s5] sm:$0x7]
  %v713 = vld [vmem:[%s6] sm:$0x7]
  %730 = vrot.lane.b32.xlu0 %v326, 127
  %v731 = vpop.permute.xlu0 %730
  %732 = vrot.lane.b32.xlu0 %v327, 127
  %v733 = vpop.permute.xlu0 %732
  %734 = vrot.lane.b32.xlu0 %v328, 127
  %v735 = vpop.permute.xlu0 %734
  %736 = vrot.lane.b32.xlu0 %v329, 127
  %v737 = vpop.permute.xlu0 %736
  %738 = vrot.lane.b32.xlu0 %v330, 127
  %v739 = vpop.permute.xlu0 %738
  %740 = vrot.lane.b32.xlu0 %v331, 127
  %v741 = vpop.permute.xlu0 %740
  %742 = vrot.lane.b32.xlu0 %v332, 127
  %v743 = vpop.permute.xlu0 %742
  %744 = vrot.lane.b32.xlu0 %v333, 127
  %v745 = vpop.permute.xlu0 %744
  %746 = vrot.lane.b32.xlu0 %v334, 127
  %v747 = vpop.permute.xlu0 %746
  %748 = vrot.lane.b32.xlu0 %v335, 127
  %v749 = vpop.permute.xlu0 %748
  %750 = vrot.lane.b32.xlu0 %v336, 127
  %v751 = vpop.permute.xlu0 %750
  %752 = vrot.lane.b32.xlu0 %v337, 127
  %v753 = vpop.permute.xlu0 %752
  %754 = vrot.lane.b32.xlu0 %v338, 127
  %v755 = vpop.permute.xlu0 %754
  %756 = vrot.lane.b32.xlu0 %v339, 127
  %v757 = vpop.permute.xlu0 %756
  %758 = vrot.lane.b32.xlu0 %v340, 127
  %v759 = vpop.permute.xlu0 %758
  %760 = vrot.lane.b32.xlu0 %v341, 127
  %v761 = vpop.permute.xlu0 %760
  %778 = vmatprep.subr.mxu0 0.0
  %779 = vmatpush1.msra.mxu0 %v761
  %780 = vmatprep.subr.mxu0 0.0
  %781 = vmatpush1.msra.mxu0 %v759
  %782 = vmatprep.subr.mxu0 0.0
  %783 = vmatpush1.msra.mxu0 %v757
  %784 = vmatprep.subr.mxu0 0.0
  %785 = vmatpush1.msra.mxu0 %v755
  %786 = vmatprep.subr.mxu0 0.0
  %787 = vmatpush1.msra.mxu0 %v753
  %788 = vmatprep.subr.mxu0 0.0
  %789 = vmatpush1.msra.mxu0 %v751
  %790 = vmatprep.subr.mxu0 0.0
  %791 = vmatpush1.msra.mxu0 %v749
  %792 = vmatprep.subr.mxu0 0.0
  %793 = vmatpush1.msra.mxu0 %v747
  %794 = vmatprep.subr.mxu0 0.0
  %795 = vmatpush1.msra.mxu0 %v745
  %796 = vmatprep.subr.mxu0 0.0
  %797 = vmatpush1.msra.mxu0 %v743
  %798 = vmatprep.subr.mxu0 0.0
  %799 = vmatpush1.msra.mxu0 %v741
  %800 = vmatprep.subr.mxu0 0.0
  %801 = vmatpush1.msra.mxu0 %v739
  %802 = vmatprep.subr.mxu0 0.0
  %803 = vmatpush1.msra.mxu0 %v737
  %804 = vmatprep.subr.mxu0 0.0
  %805 = vmatpush1.msra.mxu0 %v735
  %806 = vmatprep.subr.mxu0 0.0
  %807 = vmatpush1.msra.mxu0 %v733
  %808 = vmatprep.subr.mxu0 0.0
  %809 = vmatpush1.msra.mxu0 %v731
  %810 = vmatprep.subr.mxu0 0.0
  %811 = vmatpush2.msra.mxu0 0.0
  %812 = vmatprep.subr.mxu0 0.0
  %813 = vmatpush2.msra.mxu0 0.0
  %814 = vmatprep.subr.mxu0 0.0
  %815 = vmatpush2.msra.mxu0 0.0
  %816 = vmatprep.subr.mxu0 0.0
  %817 = vmatpush2.msra.mxu0 0.0
  %818 = vmatprep.subr.mxu0 0.0
  %819 = vmatpush2.msra.mxu0 0.0
  %820 = vmatprep.subr.mxu0 0.0
  %821 = vmatpush2.msra.mxu0 0.0
  %822 = vmatprep.subr.mxu0 0.0
  %823 = vmatpush2.msra.mxu0 0.0
  %824 = vmatprep.subr.mxu0 0.0
  %825 = vmatpush2.msra.mxu0 0.0
  %826 = vmatprep.subr.mxu0 0.0
  %827 = vmatpush2.msra.mxu0 0.0
  %828 = vmatprep.subr.mxu0 0.0
  %829 = vmatpush2.msra.mxu0 0.0
  %830 = vmatprep.subr.mxu0 0.0
  %831 = vmatpush2.msra.mxu0 0.0
  %832 = vmatprep.subr.mxu0 0.0
  %833 = vmatpush2.msra.mxu0 0.0
  %834 = vmatprep.subr.mxu0 0.0
  %835 = vmatpush2.msra.mxu0 0.0
  %836 = vmatprep.subr.mxu0 0.0
  %837 = vmatpush2.msra.mxu0 0.0
  %838 = vmatprep.subr.mxu0 0.0
  %839 = vmatpush2.msra.mxu0 0.0
  %840 = vmatprep.subr.mxu0 0.0
  %841 = vmatpush2.msra.mxu0 0.0
  %842 = vmatprep.mubr.f32.mxu0 0.0
  %843 = vmatmul.mubr.f32.gmra.mxu0 %v712
  %v844 = vpop.f32.mrf.mxu0
  %v845 = vadd.f32 %v713, %v844
  %v846 = vpop.f32.mrf.mxu0
  %847 = vdwg.mxu0
  %849 = vset.pattern.permute.xlu0 0
  %850 = vperm.xlu0 %849, %v845
  %v851 = vpop.permute.xlu0 %850
  %853 = vmatprep.subr.mxu0 0.0
  %854 = vmatpush1.msra.mxu0 %v709
  %855 = vmatprep.subr.mxu0 0.0
  %856 = vmatpush1.msra.mxu0 %v704
  %857 = vmatprep.subr.mxu0 0.0
  %858 = vmatpush1.msra.mxu0 %v699
  %859 = vmatprep.subr.mxu0 0.0
  %860 = vmatpush1.msra.mxu0 %v694
  %861 = vmatprep.subr.mxu0 0.0
  %862 = vmatpush1.msra.mxu0 %v689
  %863 = vmatprep.subr.mxu0 0.0
  %864 = vmatpush1.msra.mxu0 %v684
  %865 = vmatprep.subr.mxu0 0.0
  %866 = vmatpush1.msra.mxu0 %v679
  %867 = vmatprep.subr.mxu0 0.0
  %868 = vmatpush1.msra.mxu0 %v674
  %869 = vmatprep.subr.mxu0 0.0
  %870 = vmatpush1.msra.mxu0 %v669
  %871 = vmatprep.subr.mxu0 0.0
  %872 = vmatpush1.msra.mxu0 %v664
  %873 = vmatprep.subr.mxu0 0.0
  %874 = vmatpush1.msra.mxu0 %v659
  %875 = vmatprep.subr.mxu0 0.0
  %876 = vmatpush1.msra.mxu0 %v654
  %877 = vmatprep.subr.mxu0 0.0
  %878 = vmatpush1.msra.mxu0 %v649
  %879 = vmatprep.subr.mxu0 0.0
  %880 = vmatpush1.msra.mxu0 %v644
  %881 = vmatprep.subr.mxu0 0.0
  %882 = vmatpush1.msra.mxu0 %v639
  %883 = vmatprep.subr.mxu0 0.0
  %884 = vmatpush1.msra.mxu0 %v634
  %885 = vmatprep.subr.mxu0 0.0
  %886 = vmatpush2.msra.mxu0 0.0
  %887 = vmatprep.subr.mxu0 0.0
  %888 = vmatpush2.msra.mxu0 0.0
  %889 = vmatprep.subr.mxu0 0.0
  %890 = vmatpush2.msra.mxu0 0.0
  %891 = vmatprep.subr.mxu0 0.0
  %892 = vmatpush2.msra.mxu0 0.0
  %893 = vmatprep.subr.mxu0 0.0
  %894 = vmatpush2.msra.mxu0 0.0
  %895 = vmatprep.subr.mxu0 0.0
  %896 = vmatpush2.msra.mxu0 0.0
  %897 = vmatprep.subr.mxu0 0.0
  %898 = vmatpush2.msra.mxu0 0.0
  %899 = vmatprep.subr.mxu0 0.0
  %900 = vmatpush2.msra.mxu0 0.0
  %901 = vmatprep.subr.mxu0 0.0
  %902 = vmatpush2.msra.mxu0 0.0
  %903 = vmatprep.subr.mxu0 0.0
  %904 = vmatpush2.msra.mxu0 0.0
  %905 = vmatprep.subr.mxu0 0.0
  %906 = vmatpush2.msra.mxu0 0.0
  %907 = vmatprep.subr.mxu0 0.0
  %908 = vmatpush2.msra.mxu0 0.0
  %909 = vmatprep.subr.mxu0 0.0
  %910 = vmatpush2.msra.mxu0 0.0
  %911 = vmatprep.subr.mxu0 0.0
  %912 = vmatpush2.msra.mxu0 0.0
  %913 = vmatprep.subr.mxu0 0.0
  %914 = vmatpush2.msra.mxu0 0.0
  %915 = vmatprep.subr.mxu0 0.0
  %916 = vmatpush2.msra.mxu0 0.0
  %917 = vmatprep.mubr.f32.mxu0 0.0
  %918 = vmatmul.mubr.f32.gmra.mxu0 %v712
  %v919 = vpop.f32.mrf.mxu0
  %v920 = vadd.f32 %v851, %v919
  %v921 = vpop.f32.mrf.mxu0
  %922 = vdwg.mxu0
  %vm923 = vcmp.ge.f32.partialorder %v920, 0.0
  %v924 = vmul.f32 %v920, 0.01
  %v925 = vsel %vm923, %v920, %v924
  %927 = vset.pattern.permute.xlu0 1
  %928 = vperm.xlu0 %927, %v713
  %v929 = vpop.permute.xlu0 %928
  %v931 = vmul.f32 %v925, %v929
  %vm932 = vcmask 1042432
  %v933 = vsel %vm932, %v931, 0.0
  %v934 = vrot.slane %v933, 4
  %v935 = vadd.f32 %v933, %v934
  %v936 = vrot.slane %v935, 2
  %v937 = vadd.f32 %v935, %v936
  %v938 = vrot.slane %v937, 1
  %v939 = vadd.f32 %v937, %v938
  %940 = vset.pattern.permute.xlu0 0
  %941 = vperm.xlu0 %940, %v29
  %v942 = vpop.permute.xlu0 %941
  %v944 = vlaneseq
  %v945 = vshrl.u32 %v944, 7
  %v946 = vsub.s32 0, %v945
  %v947 = vrot.slane %v942, %v946
  %v948 = vadd.f32 %v939, %v947
  %v949 = vxor.u32 %v948, 2147483648
  %v950 = vmul.f32 %v949, 1.442695
  %v951 = vpow.pop %v950
  %v952 = vadd.f32 %v951, 1.0
  %v953 = vrcp.pop %v952
  %v954 = vmul.f32 1.0, %v953
  %955 = vst [vmem:[%s8] sm:$0x1] %v954
  // Predicated region
  $region34: #{pu_model_forward.3} parent=0 // pred_check
    _
  $region35: #{pu_model_forward.3} parent=0 // pred_check_branch
    %957 = sbr.rel (0) target = $region37
  $region36: #{pu_model_forward.3} parent=0 // pred_region
    _
  $region37: #{pu_model_forward.3} parent=0 // pred_fallthru
    _
  // Predicated region
  $region38: #{pu_model_forward.3} parent=0 // pred_check
    _
  $region39: #{pu_model_forward.3} parent=0 // pred_check_branch
    %959 = sbr.rel (0) target = $region41
  $region40: #{pu_model_forward.3} parent=0 // pred_region
    _
  $region41: #{pu_model_forward.3} parent=0 // pred_fallthru
    _

</llo_original>
